<compile_context>
chip_gen: v7x
topology: tpu7x:2x2x1
jax: 0.10.0
libtpu: 0.0.40
codegen_flags: <defaults>
</compile_context>

<pallas_src>
import functools
import math
from typing import NamedTuple, Tuple

import jax
import jax.numpy as jnp
from jax import lax
from jax.experimental import pallas as pl
from jax.experimental.pallas import tpu as pltpu


def _round_up(x, m):
    return ((x + m - 1) // m) * m


def _cdiv_ceil(a, b):
    return -(-a // b)


# ----------------------------- Pallas kernels --------------------------------

def _matmul_bias_act_kernel(w_ref, x_ref, b_ref, o_ref, *, relu):
    """(Cout, K) @ (K, tm) + bias (+ReLU).  Lane-dense output tile (Cout, tm)."""
    acc = jnp.dot(w_ref[...], x_ref[...], preferred_element_type=jnp.float32)
    acc = acc + b_ref[...]                      # (Cout, 1) broadcasts over lanes
    if relu:
        acc = jnp.maximum(acc, 0.0)
    o_ref[...] = acc.astype(o_ref.dtype)


def _pool_s1_kernel(x_ref, o_ref, *, kh, kw):
    """Stride-1 max pool: max over kh*kw shifted slices (fused, no patch matrix)."""
    _, Ho, Wo = o_ref.shape
    m = x_ref[0, 0:Ho, 0:Wo]
    for di in range(kh):
        for dj in range(kw):
            if di == 0 and dj == 0:
                continue
            m = jnp.maximum(m, x_ref[0, di:di + Ho, dj:dj + Wo])
    o_ref[0] = m


def _pool_windows_kernel(x_ref, o_ref, *, kh, kw, sh, sw):
    """Max pool with few output positions but (possibly) huge windows (SPP levels)."""
    _, Ho, Wo = o_ref.shape
    rows = []
    for oh in range(Ho):
        cells = []
        for ow in range(Wo):
            win = x_ref[0, oh * sh:oh * sh + kh, ow * sw:ow * sw + kw]
            cell = jnp.max(win, axis=1, keepdims=True)    # (kh, 1)  lane reduce
            cell = jnp.max(cell, axis=0, keepdims=True)   # (1, 1)   sublane reduce
            cells.append(cell)
        rows.append(jnp.concatenate(cells, axis=1) if Wo > 1 else cells[0])
    res = jnp.concatenate(rows, axis=0) if Ho > 1 else rows[0]
    o_ref[0] = res


# --------------------------- Pallas call wrappers -----------------------------

def _matmul_bias_act(w_mat, patches, bias, relu, tile_m=8192):
    """out[co, m] = sum_k w_mat[co, k] * patches[k, m] + bias[co]  (+ReLU).

    M (= N*Ho*Wo) is the lane axis, tiled by multiples of 128 (lane-dense stores)."""
    Cout, K = w_mat.shape
    _, M = patches.shape
    tm = min(tile_m, _round_up(M, 128))
    Mp = _round_up(M, tm)
    if Mp != M:
        patches = jnp.pad(patches, ((0, 0), (0, Mp - M)))
    b2 = bias.reshape(Cout, 1).astype(jnp.float32)
    out = pl.pallas_call(
        functools.partial(_matmul_bias_act_kernel, relu=relu),
        out_shape=jax.ShapeDtypeStruct((Cout, Mp), jnp.float32),
        grid=(Mp // tm,),
        in_specs=[
            pl.BlockSpec((Cout, K), lambda i: (0, 0)),
            pl.BlockSpec((K, tm), lambda i: (0, i)),
            pl.BlockSpec((Cout, 1), lambda i: (0, 0)),
        ],
        out_specs=pl.BlockSpec((Cout, tm), lambda i: (0, i)),
        compiler_params=pltpu.CompilerParams(dimension_semantics=("parallel",)),
    )(w_mat, patches, b2)
    return out[:, :M]


def _pool_s1(x, kh, kw):
    B, H, W = x.shape
    Ho, Wo = H - kh + 1, W - kw + 1
    return pl.pallas_call(
        functools.partial(_pool_s1_kernel, kh=kh, kw=kw),
        out_shape=jax.ShapeDtypeStruct((B, Ho, Wo), x.dtype),
        grid=(B,),
        in_specs=[pl.BlockSpec((1, H, W), lambda i: (i, 0, 0))],
        out_specs=pl.BlockSpec((1, Ho, Wo), lambda i: (i, 0, 0)),
        compiler_params=pltpu.CompilerParams(dimension_semantics=("parallel",)),
    )(x)


def _pool_windows(x, kh, kw, sh, sw, Ho, Wo):
    B, H, W = x.shape
    return pl.pallas_call(
        functools.partial(_pool_windows_kernel, kh=kh, kw=kw, sh=sh, sw=sw),
        out_shape=jax.ShapeDtypeStruct((B, Ho, Wo), x.dtype),
        grid=(B,),
        in_specs=[pl.BlockSpec((1, H, W), lambda i: (i, 0, 0))],
        out_specs=pl.BlockSpec((1, Ho, Wo), lambda i: (i, 0, 0)),
        compiler_params=pltpu.CompilerParams(dimension_semantics=("parallel",)),
    )(x)


# ------------------------------ dense layers ----------------------------------

def conv2d_dense(x, w, b, stride, relu, compute_dtype=jnp.bfloat16):
    """NCHW conv (no padding).  Patches laid out (K, M), M = N*Ho*Wo as the lane axis.
    Patch extraction is plain-JAX data movement; matmul/bias/ReLU run in Pallas."""
    N, Cin, H, W = x.shape
    Cout, _, kh, kw = w.shape
    sh = sw = stride
    Ho = (H - kh) // sh + 1
    Wo = (W - kw) // sw + 1
    xc = x.astype(compute_dtype)
    slices = []
    for ci in range(Cin):
        for di in range(kh):
            for dj in range(kw):
                s = lax.slice(
                    xc, (0, ci, di, dj),
                    (N, ci + 1, di + sh * (Ho - 1) + 1, dj + sw * (Wo - 1) + 1),
                    (1, 1, sh, sw))                      # (N, 1, Ho, Wo)
                slices.append(s.reshape(N, Ho, Wo))
    patches = jnp.stack(slices, axis=0).reshape(Cin * kh * kw, N * Ho * Wo)
    w_mat = w.reshape(Cout, Cin * kh * kw).astype(compute_dtype)
    out2d = _matmul_bias_act(w_mat, patches, b, relu)    # (Cout, M) f32
    return out2d.reshape(Cout, N, Ho, Wo).transpose(1, 0, 2, 3)


def maxpool2d_dense(x, kernel, stride):
    """NCHW max-pool, floor mode, no padding (nn.MaxPool2d defaults)."""
    kh, kw = kernel if isinstance(kernel, (tuple, list)) else (kernel, kernel)
    sh, sw = stride if isinstance(stride, (tuple, list)) else (stride, stride)
    N, C, H, W = x.shape
    Ho = (H - kh) // sh + 1
    Wo = (W - kw) // sw + 1
    xb = x.reshape(N * C, H, W)
    if kh * kw <= Ho * Wo:
        # few window offsets: fused stride-1 pool in Pallas, strided subsample in glue
        s1 = _pool_s1(xb, kh, kw)                        # (N*C, H-kh+1, W-kw+1)
        out = s1[:, ::sh, ::sw][:, :Ho, :Wo]
    else:
        # few output positions (SPP levels with huge windows): per-window reduction
        out = _pool_windows(xb, kh, kw, sh, sw, Ho, Wo)
    return out.reshape(N, C, Ho, Wo)


# ---------------- constant + block activation representation ------------------
# With padding=512 around a tiny image, almost all of every activation map is a
# per-channel constant.  Each activation is tracked as (full size, per-channel
# constant, dense block, block offset); Pallas kernels only touch the block.

class _Rep(NamedTuple):
    block: jax.Array            # (N, C, bh, bw) dense values
    off: Tuple[int, int]        # (row, col) offset of the block in the full map
    full: Tuple[int, int]       # (H, W) of the full (virtual) map
    const: jax.Array            # (C,) value of the map everywhere outside the block


def _irange(off, blen, out_len, k, s):
    """Output indices whose input window [s*o, s*o+k-1] can touch block rows."""
    lo = max(0, _cdiv_ceil(off - k + 1, s))
    hi = min(out_len - 1, (off + blen - 1) // s)
    lo = min(lo, out_len - 1)
    hi = max(hi, lo)
    return lo, hi


def _extract(rep, rlo, rhi, clo, chi):
    """Dense (N, C, ...) window [rlo:rhi, clo:chi] of the virtual full map."""
    N, C, bh, bw = rep.block.shape
    oh, ow = rep.off
    h, w = rhi - rlo + 1, chi - clo + 1
    out = jnp.broadcast_to(
        rep.const.reshape(1, C, 1, 1).astype(rep.block.dtype), (N, C, h, w))
    ra, rb = max(rlo, oh), min(rhi, oh + bh - 1)
    ca, cb = max(clo, ow), min(chi, ow + bw - 1)
    if ra <= rb and ca <= cb:
        sub = rep.block[:, :, ra - oh:rb - oh + 1, ca - ow:cb - ow + 1]
        out = out.at[:, :, ra - rlo:rb - rlo + 1, ca - clo:cb - clo + 1].set(sub)
    return out


def _rep_conv(rep, w, b, stride, relu, compute_dtype):
    Cout, Cin, kh, kw = w.shape
    Hf, Wf = rep.full
    Ho = (Hf - kh) // stride + 1
    Wo = (Wf - kw) // stride + 1
    _, _, bh, bw = rep.block.shape
    r0, r1 = _irange(rep.off[0], bh, Ho, kh, stride)
    c0, c1 = _irange(rep.off[1], bw, Wo, kw, stride)
    win = _extract(rep, stride * r0, stride * r1 + kh - 1,
                   stride * c0, stride * c1 + kw - 1)
    blk = conv2d_dense(win, w, b, stride, relu, compute_dtype)
    # conv of an all-constant region (same operand truncation as the kernel path)
    w_t = w.astype(compute_dtype).astype(jnp.float32)
    c_t = rep.const.astype(compute_dtype).astype(jnp.float32)
    cst = jnp.einsum("oc,c->o", w_t.sum(axis=(2, 3)), c_t) + b.astype(jnp.float32)
    if relu:
        cst = jnp.maximum(cst, 0.0)
    return _Rep(block=blk, off=(r0, c0), full=(Ho, Wo), const=cst)


def _rep_pool(rep, k, s):
    Hf, Wf = rep.full
    Ho = (Hf - k) // s + 1
    Wo = (Wf - k) // s + 1
    _, _, bh, bw = rep.block.shape
    r0, r1 = _irange(rep.off[0], bh, Ho, k, s)
    c0, c1 = _irange(rep.off[1], bw, Wo, k, s)
    win = _extract(rep, s * r0, s * r1 + k - 1, s * c0, s * c1 + k - 1)
    blk = maxpool2d_dense(win, k, s)
    return _Rep(block=blk, off=(r0, c0), full=(Ho, Wo), const=rep.const)


def _rep_materialize(rep):
    N, C, bh, bw = rep.block.shape
    Hf, Wf = rep.full
    oh, ow = rep.off
    out = jnp.broadcast_to(
        rep.const.reshape(1, C, 1, 1).astype(rep.block.dtype), (N, C, Hf, Wf))
    return out.at[:, :, oh:oh + bh, ow:ow + bw].set(rep.block)


# -------------------------------- forward pass --------------------------------

def spatial_pyramid_pooling(prev_conv, out_pool_size):
    N, C, H, W = prev_conv.shape
    parts = []
    for psz in out_pool_size:
        h_window = math.ceil(H / psz)
        w_window = math.ceil(W / psz)
        h_stride = math.floor(H / psz)
        w_stride = math.floor(W / psz)
        pooled = maxpool2d_dense(prev_conv, (h_window, w_window), (h_stride, w_stride))
        parts.append(pooled.reshape(N, -1))              # NCHW flatten, same as torch .view
    return jnp.concatenate(parts, axis=1)


def single_feature_conv_forward(byte, params, output_pooling_size,
                                compute_dtype=jnp.bfloat16, padding=512):
    N, Cin, H, W = byte.shape
    rep = _Rep(block=byte.astype(jnp.float32),
               off=(padding, padding),
               full=(H + 2 * padding, W + 2 * padding),
               const=jnp.zeros((Cin,), jnp.float32))     # zero padding region
    rep = _rep_conv(rep, params["w1"], params["b1"], 1, True, compute_dtype)   # conv1+relu
    rep = _rep_pool(rep, 3, 2)                                                 # pool1
    rep = _rep_conv(rep, params["w2"], params["b2"], 3, True, compute_dtype)   # conv2+relu
    rep = _rep_pool(rep, 3, 2)                                                 # pool2
    rep = _rep_conv(rep, params["w3"], params["b3"], 1, False, compute_dtype)  # conv3
    h = _rep_materialize(rep)                           # (N, out_channel, 82, 82)
    return spatial_pyramid_pooling(h, output_pooling_size)


# --------------------------- pure-XLA reference --------------------------------

def reference_forward(x, params, output_pooling_size, compute_dtype=jnp.bfloat16,
                      padding=512):
    """Reference with the same per-layer operand truncation as the Pallas path."""
    def trunc(a):
        return a.astype(compute_dtype).astype(jnp.float32)

    def conv(h, w, b, stride, pad, relu):
        y = lax.conv_general_dilated(
            trunc(h), trunc(w), (stride, stride), [(pad, pad), (pad, pad)],
            dimension_numbers=("NCHW", "OIHW", "NCHW"),
            precision=lax.Precision.HIGHEST)
        y = y + b.reshape(1, -1, 1, 1)
        return jnp.maximum(y, 0.0) if relu else y

    def pool(h, k, s):
        kh, kw = k if isinstance(k, (tuple, list)) else (k, k)
        sh, sw = s if isinstance(s, (tuple, list)) else (s, s)
        return lax.reduce_window(h, -jnp.inf, lax.max,
                                 (1, 1, kh, kw), (1, 1, sh, sw), "VALID")

    h = conv(x, params["w1"], params["b1"], 1, padding, True)
    h = pool(h, 3, 2)
    h = conv(h, params["w2"], params["b2"], 3, 0, True)
    h = pool(h, 3, 2)
    h = conv(h, params["w3"], params["b3"], 1, 0, False)
    N, C, H, W = h.shape
    parts = []
    for psz in output_pooling_size:
        hw, ww = math.ceil(H / psz), math.ceil(W / psz)
        hs, ws = math.floor(H / psz), math.floor(W / psz)
        parts.append(pool(h, (hw, ww), (hs, ws)).reshape(N, -1))
    return jnp.concatenate(parts, axis=1)


# --------------------------------- params --------------------------------------

def init_params(key, in_channel, hidden_channel, out_channel):
    """Deterministic init mimicking nn.Conv2d's default uniform(-1/sqrt(fan_in), ..)."""
    def conv_init(k, cout, cin, ksz):
        fan_in = cin * ksz * ksz
        bound = 1.0 / math.sqrt(fan_in)
        kw_, kb_ = jax.random.split(k)
        w = jax.random.uniform(kw_, (cout, cin, ksz, ksz), jnp.float32, -bound, bound)
        b = jax.random.uniform(kb_, (cout,), jnp.float32, -bound, bound)
        return w, b

    k1, k2, k3 = jax.random.split(key, 3)
    w1, b1 = conv_init(k1, hidden_channel // 2, in_channel, 5)
    w2, b2 = conv_init(k2, hidden_channel, hidden_channel // 2, 5)
    w3, b3 = conv_init(k3, out_channel, hidden_channel, 3)
    return dict(w1=w1, b1=b1, w2=w2, b2=b2, w3=w3, b3=b3)


if __name__ == "__main__":
    key = jax.random.PRNGKey(0)
    kx, kp = jax.random.split(key)

    N, in_channel, H, W = 2, 1, 8, 8
    hidden_channel, out_channel = 4, 8
    output_pooling_size = (1, 2, 4)

    x = jax.random.normal(kx, (N, in_channel, H, W), jnp.float32)
    params = init_params(kp, in_channel, hidden_channel, out_channel)

    fwd = jax.jit(functools.partial(single_feature_conv_forward,
                                    output_pooling_size=output_pooling_size))
    out = fwd(x, params)
    jax.block_until_ready(out)

    # --- shape check against the PyTorch formulas ---------------------------------
    def conv_out(h, k, s, p=0):
        return (h + 2 * p - k) // s + 1
    h1 = conv_out(H, 5, 1, 512)          # conv1, padding 512
    h2 = conv_out(h1, 3, 2)              # pool1
    h3 = conv_out(h2, 5, 3)              # conv2
    h4 = conv_out(h3, 3, 2)              # pool2
    h5 = conv_out(h4, 3, 1)              # conv3
    expected = 0
    for psz in output_pooling_size:
        oh = (h5 - math.ceil(h5 / psz)) // math.floor(h5 / psz) + 1
        expected += out_channel * oh * oh
    assert out.shape == (N, expected), (out.shape, (N, expected))
    assert bool(jnp.all(jnp.isfinite(out)))

    # --- numerical check vs. a pure-XLA reference (same per-layer truncation) -----
    ref = jax.jit(functools.partial(reference_forward,
                                    output_pooling_size=output_pooling_size))(x, params)
    max_err = float(jnp.max(jnp.abs(out - ref)))
    assert bool(jnp.allclose(out, ref, rtol=2e-2, atol=2e-2)), max_err

    print("KERNEL_OK")
</pallas_src>

<mosaic_0001>
module attributes {stable_mosaic.version = 11 : i64} {
  func.func @_matmul_bias_act_kernel(%arg0: i32, %arg1: memref<2x25xbf16, #tpu.memory_space<vmem>>, %arg2: memref<25x384xbf16, #tpu.memory_space<vmem>>, %arg3: memref<2x1xf32, #tpu.memory_space<vmem>>, %arg4: memref<2x384xf32, #tpu.memory_space<vmem>>) attributes {dimension_semantics = [#tpu.dimension_semantics<parallel>], iteration_bounds = array<i64: 1>, scalar_prefetch = 0 : i64, scratch_operands = 0 : i64, tpu.core_type = #tpu.core_type<tc>, window_params = [{pipeline_mode = #tpu.pipeline_mode<synchronous>, transform_indices = @transform_0, window_bounds = array<i64: 2, 25>}, {transform_indices = @transform_1, window_bounds = array<i64: 25, 384>}, {pipeline_mode = #tpu.pipeline_mode<synchronous>, transform_indices = @transform_2, window_bounds = array<i64: 2, 1>}, {transform_indices = @transform_3, window_bounds = array<i64: 2, 384>}]} {
    %c0 = arith.constant 0 : index
    %c0_0 = arith.constant 0 : index
    %0 = vector.load %arg1[%c0, %c0_0] : memref<2x25xbf16, #tpu.memory_space<vmem>>, vector<2x25xbf16>
    %c0_1 = arith.constant 0 : index
    %c0_2 = arith.constant 0 : index
    %1 = vector.load %arg2[%c0_1, %c0_2] : memref<25x384xbf16, #tpu.memory_space<vmem>>, vector<25x384xbf16>
    %cst = arith.constant dense<0.000000e+00> : vector<2x384xf32>
    %2 = tpu.matmul %0, %1, %cst {dimension_numbers = #tpu.dot_dimension_numbers<[1], [0], [0], [1], [0, 0, 1, 1], [], []>} : vector<2x25xbf16>, vector<25x384xbf16>, vector<2x384xf32> -> vector<2x384xf32>
    %c0_3 = arith.constant 0 : index
    %c0_4 = arith.constant 0 : index
    %3 = vector.load %arg3[%c0_3, %c0_4] : memref<2x1xf32, #tpu.memory_space<vmem>>, vector<2x1xf32>
    %4 = vector.broadcast %3 : vector<2x1xf32> to vector<2x384xf32>
    %5 = arith.addf %2, %4 : vector<2x384xf32>
    %cst_5 = arith.constant 0.000000e+00 : f32
    %6 = vector.broadcast %cst_5 : f32 to vector<2x384xf32>
    %7 = arith.maximumf %5, %6 : vector<2x384xf32>
    %c0_6 = arith.constant 0 : index
    %c0_7 = arith.constant 0 : index
    %8 = vector.load %arg4[%c0_6, %c0_7] : memref<2x384xf32, #tpu.memory_space<vmem>>, vector<2x384xf32>
    tpu.vector_store %arg4[%c0_6, %c0_7], %7 {strides = array<i32>} : memref<2x384xf32, #tpu.memory_space<vmem>>, vector<2x384xf32>,
    return
  }
  func.func @transform_0(%arg0: i32) -> (i32, i32) {
    %c0_i32 = arith.constant 0 : i32
    %c0_i32_0 = arith.constant 0 : i32
    %c0_i32_1 = arith.constant 0 : i32
    return %c0_i32, %c0_i32_0 : i32, i32
  }
  func.func @transform_1(%arg0: i32) -> (i32, i32) {
    %c0_i32 = arith.constant 0 : i32
    %c0_i32_0 = arith.constant 0 : i32
    return %c0_i32, %arg0 : i32, i32
  }
  func.func @transform_2(%arg0: i32) -> (i32, i32) {
    %c0_i32 = arith.constant 0 : i32
    %c0_i32_0 = arith.constant 0 : i32
    %c0_i32_1 = arith.constant 0 : i32
    return %c0_i32, %c0_i32_0 : i32, i32
  }
  func.func @transform_3(%arg0: i32) -> (i32, i32) {
    %c0_i32 = arith.constant 0 : i32
    %c0_i32_0 = arith.constant 0 : i32
    return %c0_i32, %arg0 : i32, i32
  }
}

module attributes {stable_mosaic.version = 11 : i64} {
  func.func @_pool_s1_kernel(%arg0: i32, %arg1: memref<1x15x15xf32, #tpu.memory_space<vmem>>, %arg2: memref<1x13x13xf32, #tpu.memory_space<vmem>>) attributes {dimension_semantics = [#tpu.dimension_semantics<parallel>], iteration_bounds = array<i64: 4>, scalar_prefetch = 0 : i64, scratch_operands = 0 : i64, tpu.core_type = #tpu.core_type<tc>, window_params = [{transform_indices = @transform_0, window_bounds = array<i64: 1, 15, 15>}, {transform_indices = @transform_1, window_bounds = array<i64: 1, 13, 13>}]} {
    %c0 = arith.constant 0 : index
    %c0_0 = arith.constant 0 : index
    %c0_1 = arith.constant 0 : index
    %0 = vector.load %arg1[%c0, %c0_0, %c0_1] : memref<1x15x15xf32, #tpu.memory_space<vmem>>, vector<1x13x13xf32>
    %1 = vector.shape_cast %0 : vector<1x13x13xf32> to vector<13x13xf32>
    %c0_2 = arith.constant 0 : index
    %c0_3 = arith.constant 0 : index
    %c1 = arith.constant 1 : index
    %2 = vector.load %arg1[%c0_2, %c0_3, %c1] : memref<1x15x15xf32, #tpu.memory_space<vmem>>, vector<1x13x13xf32>
    %3 = vector.shape_cast %2 : vector<1x13x13xf32> to vector<13x13xf32>
    %4 = arith.maximumf %1, %3 : vector<13x13xf32>
    %c0_4 = arith.constant 0 : index
    %c0_5 = arith.constant 0 : index
    %c2 = arith.constant 2 : index
    %5 = vector.load %arg1[%c0_4, %c0_5, %c2] : memref<1x15x15xf32, #tpu.memory_space<vmem>>, vector<1x13x13xf32>
    %6 = vector.shape_cast %5 : vector<1x13x13xf32> to vector<13x13xf32>
    %7 = arith.maximumf %4, %6 : vector<13x13xf32>
    %c0_6 = arith.constant 0 : index
    %c1_7 = arith.constant 1 : index
    %c0_8 = arith.constant 0 : index
    %8 = vector.load %arg1[%c0_6, %c1_7, %c0_8] : memref<1x15x15xf32, #tpu.memory_space<vmem>>, vector<1x13x13xf32>
    %9 = vector.shape_cast %8 : vector<1x13x13xf32> to vector<13x13xf32>
    %10 = arith.maximumf %7, %9 : vector<13x13xf32>
    %c0_9 = arith.constant 0 : index
    %c1_10 = arith.constant 1 : index
    %c1_11 = arith.constant 1 : index
    %11 = vector.load %arg1[%c0_9, %c1_10, %c1_11] : memref<1x15x15xf32, #tpu.memory_space<vmem>>, vector<1x13x13xf32>
    %12 = vector.shape_cast %11 : vector<1x13x13xf32> to vector<13x13xf32>
    %13 = arith.maximumf %10, %12 : vector<13x13xf32>
    %c0_12 = arith.constant 0 : index
    %c1_13 = arith.constant 1 : index
    %c2_14 = arith.constant 2 : index
    %14 = vector.load %arg1[%c0_12, %c1_13, %c2_14] : memref<1x15x15xf32, #tpu.memory_space<vmem>>, vector<1x13x13xf32>
    %15 = vector.shape_cast %14 : vector<1x13x13xf32> to vector<13x13xf32>
    %16 = arith.maximumf %13, %15 : vector<13x13xf32>
    %c0_15 = arith.constant 0 : index
    %c2_16 = arith.constant 2 : index
    %c0_17 = arith.constant 0 : index
    %17 = vector.load %arg1[%c0_15, %c2_16, %c0_17] : memref<1x15x15xf32, #tpu.memory_space<vmem>>, vector<1x13x13xf32>
    %18 = vector.shape_cast %17 : vector<1x13x13xf32> to vector<13x13xf32>
    %19 = arith.maximumf %16, %18 : vector<13x13xf32>
    %c0_18 = arith.constant 0 : index
    %c2_19 = arith.constant 2 : index
    %c1_20 = arith.constant 1 : index
    %20 = vector.load %arg1[%c0_18, %c2_19, %c1_20] : memref<1x15x15xf32, #tpu.memory_space<vmem>>, vector<1x13x13xf32>
    %21 = vector.shape_cast %20 : vector<1x13x13xf32> to vector<13x13xf32>
    %22 = arith.maximumf %19, %21 : vector<13x13xf32>
    %c0_21 = arith.constant 0 : index
    %c2_22 = arith.constant 2 : index
    %c2_23 = arith.constant 2 : index
    %23 = vector.load %arg1[%c0_21, %c2_22, %c2_23] : memref<1x15x15xf32, #tpu.memory_space<vmem>>, vector<1x13x13xf32>
    %24 = vector.shape_cast %23 : vector<1x13x13xf32> to vector<13x13xf32>
    %25 = arith.maximumf %22, %24 : vector<13x13xf32>
    %c0_24 = arith.constant 0 : index
    %c0_25 = arith.constant 0 : index
    %c0_26 = arith.constant 0 : index
    %26 = vector.load %arg2[%c0_24, %c0_25, %c0_26] : memref<1x13x13xf32, #tpu.memory_space<vmem>>, vector<1x13x13xf32>
    %27 = vector.shape_cast %26 : vector<1x13x13xf32> to vector<13x13xf32>
    %28 = vector.shape_cast %25 : vector<13x13xf32> to vector<1x13x13xf32>
    tpu.vector_store %arg2[%c0_24, %c0_25, %c0_26], %28 {strides = array<i32>} : memref<1x13x13xf32, #tpu.memory_space<vmem>>, vector<1x13x13xf32>,
    return
  }
  func.func @transform_0(%arg0: i32) -> (i32, i32, i32) {
    %c0_i32 = arith.constant 0 : i32
    %c0_i32_0 = arith.constant 0 : i32
    %c0_i32_1 = arith.constant 0 : i32
    return %arg0, %c0_i32, %c0_i32_0 : i32, i32, i32
  }
  func.func @transform_1(%arg0: i32) -> (i32, i32, i32) {
    %c0_i32 = arith.constant 0 : i32
    %c0_i32_0 = arith.constant 0 : i32
    %c0_i32_1 = arith.constant 0 : i32
    return %arg0, %c0_i32, %c0_i32_0 : i32, i32, i32
  }
}

module attributes {stable_mosaic.version = 11 : i64} {
  func.func @_matmul_bias_act_kernel(%arg0: i32, %arg1: memref<4x50xbf16, #tpu.memory_space<vmem>>, %arg2: memref<50x128xbf16, #tpu.memory_space<vmem>>, %arg3: memref<4x1xf32, #tpu.memory_space<vmem>>, %arg4: memref<4x128xf32, #tpu.memory_space<vmem>>) attributes {dimension_semantics = [#tpu.dimension_semantics<parallel>], iteration_bounds = array<i64: 1>, scalar_prefetch = 0 : i64, scratch_operands = 0 : i64, tpu.core_type = #tpu.core_type<tc>, window_params = [{pipeline_mode = #tpu.pipeline_mode<synchronous>, transform_indices = @transform_0, window_bounds = array<i64: 4, 50>}, {transform_indices = @transform_1, window_bounds = array<i64: 50, 128>}, {pipeline_mode = #tpu.pipeline_mode<synchronous>, transform_indices = @transform_2, window_bounds = array<i64: 4, 1>}, {transform_indices = @transform_3, window_bounds = array<i64: 4, 128>}]} {
    %c0 = arith.constant 0 : index
    %c0_0 = arith.constant 0 : index
    %0 = vector.load %arg1[%c0, %c0_0] : memref<4x50xbf16, #tpu.memory_space<vmem>>, vector<4x50xbf16>
    %c0_1 = arith.constant 0 : index
    %c0_2 = arith.constant 0 : index
    %1 = vector.load %arg2[%c0_1, %c0_2] : memref<50x128xbf16, #tpu.memory_space<vmem>>, vector<50x128xbf16>
    %cst = arith.constant dense<0.000000e+00> : vector<4x128xf32>
    %2 = tpu.matmul %0, %1, %cst {dimension_numbers = #tpu.dot_dimension_numbers<[1], [0], [0], [1], [0, 0, 1, 1], [], []>} : vector<4x50xbf16>, vector<50x128xbf16>, vector<4x128xf32> -> vector<4x128xf32>
    %c0_3 = arith.constant 0 : index
    %c0_4 = arith.constant 0 : index
    %3 = vector.load %arg3[%c0_3, %c0_4] : memref<4x1xf32, #tpu.memory_space<vmem>>, vector<4x1xf32>
    %4 = vector.broadcast %3 : vector<4x1xf32> to vector<4x128xf32>
    %5 = arith.addf %2, %4 : vector<4x128xf32>
    %cst_5 = arith.constant 0.000000e+00 : f32
    %6 = vector.broadcast %cst_5 : f32 to vector<4x128xf32>
    %7 = arith.maximumf %5, %6 : vector<4x128xf32>
    %c0_6 = arith.constant 0 : index
    %c0_7 = arith.constant 0 : index
    %8 = vector.load %arg4[%c0_6, %c0_7] : memref<4x128xf32, #tpu.memory_space<vmem>>, vector<4x128xf32>
    tpu.vector_store %arg4[%c0_6, %c0_7], %7 {strides = array<i32>} : memref<4x128xf32, #tpu.memory_space<vmem>>, vector<4x128xf32>,
    return
  }
  func.func @transform_0(%arg0: i32) -> (i32, i32) {
    %c0_i32 = arith.constant 0 : i32
    %c0_i32_0 = arith.constant 0 : i32
    %c0_i32_1 = arith.constant 0 : i32
    return %c0_i32, %c0_i32_0 : i32, i32
  }
  func.func @transform_1(%arg0: i32) -> (i32, i32) {
    %c0_i32 = arith.constant 0 : i32
    %c0_i32_0 = arith.constant 0 : i32
    return %c0_i32, %arg0 : i32, i32
  }
  func.func @transform_2(%arg0: i32) -> (i32, i32) {
    %c0_i32 = arith.constant 0 : i32
    %c0_i32_0 = arith.constant 0 : i32
    %c0_i32_1 = arith.constant 0 : i32
    return %c0_i32, %c0_i32_0 : i32, i32
  }
  func.func @transform_3(%arg0: i32) -> (i32, i32) {
    %c0_i32 = arith.constant 0 : i32
    %c0_i32_0 = arith.constant 0 : i32
    return %c0_i32, %arg0 : i32, i32
  }
}

module attributes {stable_mosaic.version = 11 : i64} {
  func.func @_pool_s1_kernel(%arg0: i32, %arg1: memref<1x7x7xf32, #tpu.memory_space<vmem>>, %arg2: memref<1x5x5xf32, #tpu.memory_space<vmem>>) attributes {dimension_semantics = [#tpu.dimension_semantics<parallel>], iteration_bounds = array<i64: 8>, scalar_prefetch = 0 : i64, scratch_operands = 0 : i64, tpu.core_type = #tpu.core_type<tc>, window_params = [{transform_indices = @transform_0, window_bounds = array<i64: 1, 7, 7>}, {transform_indices = @transform_1, window_bounds = array<i64: 1, 5, 5>}]} {
    %c0 = arith.constant 0 : index
    %c0_0 = arith.constant 0 : index
    %c0_1 = arith.constant 0 : index
    %0 = vector.load %arg1[%c0, %c0_0, %c0_1] : memref<1x7x7xf32, #tpu.memory_space<vmem>>, vector<1x5x5xf32>
    %1 = vector.shape_cast %0 : vector<1x5x5xf32> to vector<5x5xf32>
    %c0_2 = arith.constant 0 : index
    %c0_3 = arith.constant 0 : index
    %c1 = arith.constant 1 : index
    %2 = vector.load %arg1[%c0_2, %c0_3, %c1] : memref<1x7x7xf32, #tpu.memory_space<vmem>>, vector<1x5x5xf32>
    %3 = vector.shape_cast %2 : vector<1x5x5xf32> to vector<5x5xf32>
    %4 = arith.maximumf %1, %3 : vector<5x5xf32>
    %c0_4 = arith.constant 0 : index
    %c0_5 = arith.constant 0 : index
    %c2 = arith.constant 2 : index
    %5 = vector.load %arg1[%c0_4, %c0_5, %c2] : memref<1x7x7xf32, #tpu.memory_space<vmem>>, vector<1x5x5xf32>
    %6 = vector.shape_cast %5 : vector<1x5x5xf32> to vector<5x5xf32>
    %7 = arith.maximumf %4, %6 : vector<5x5xf32>
    %c0_6 = arith.constant 0 : index
    %c1_7 = arith.constant 1 : index
    %c0_8 = arith.constant 0 : index
    %8 = vector.load %arg1[%c0_6, %c1_7, %c0_8] : memref<1x7x7xf32, #tpu.memory_space<vmem>>, vector<1x5x5xf32>
    %9 = vector.shape_cast %8 : vector<1x5x5xf32> to vector<5x5xf32>
    %10 = arith.maximumf %7, %9 : vector<5x5xf32>
    %c0_9 = arith.constant 0 : index
    %c1_10 = arith.constant 1 : index
    %c1_11 = arith.constant 1 : index
    %11 = vector.load %arg1[%c0_9, %c1_10, %c1_11] : memref<1x7x7xf32, #tpu.memory_space<vmem>>, vector<1x5x5xf32>
    %12 = vector.shape_cast %11 : vector<1x5x5xf32> to vector<5x5xf32>
    %13 = arith.maximumf %10, %12 : vector<5x5xf32>
    %c0_12 = arith.constant 0 : index
    %c1_13 = arith.constant 1 : index
    %c2_14 = arith.constant 2 : index
    %14 = vector.load %arg1[%c0_12, %c1_13, %c2_14] : memref<1x7x7xf32, #tpu.memory_space<vmem>>, vector<1x5x5xf32>
    %15 = vector.shape_cast %14 : vector<1x5x5xf32> to vector<5x5xf32>
    %16 = arith.maximumf %13, %15 : vector<5x5xf32>
    %c0_15 = arith.constant 0 : index
    %c2_16 = arith.constant 2 : index
    %c0_17 = arith.constant 0 : index
    %17 = vector.load %arg1[%c0_15, %c2_16, %c0_17] : memref<1x7x7xf32, #tpu.memory_space<vmem>>, vector<1x5x5xf32>
    %18 = vector.shape_cast %17 : vector<1x5x5xf32> to vector<5x5xf32>
    %19 = arith.maximumf %16, %18 : vector<5x5xf32>
    %c0_18 = arith.constant 0 : index
    %c2_19 = arith.constant 2 : index
    %c1_20 = arith.constant 1 : index
    %20 = vector.load %arg1[%c0_18, %c2_19, %c1_20] : memref<1x7x7xf32, #tpu.memory_space<vmem>>, vector<1x5x5xf32>
    %21 = vector.shape_cast %20 : vector<1x5x5xf32> to vector<5x5xf32>
    %22 = arith.maximumf %19, %21 : vector<5x5xf32>
    %c0_21 = arith.constant 0 : index
    %c2_22 = arith.constant 2 : index
    %c2_23 = arith.constant 2 : index
    %23 = vector.load %arg1[%c0_21, %c2_22, %c2_23] : memref<1x7x7xf32, #tpu.memory_space<vmem>>, vector<1x5x5xf32>
    %24 = vector.shape_cast %23 : vector<1x5x5xf32> to vector<5x5xf32>
    %25 = arith.maximumf %22, %24 : vector<5x5xf32>
    %c0_24 = arith.constant 0 : index
    %c0_25 = arith.constant 0 : index
    %c0_26 = arith.constant 0 : index
    %26 = vector.load %arg2[%c0_24, %c0_25, %c0_26] : memref<1x5x5xf32, #tpu.memory_space<vmem>>, vector<1x5x5xf32>
    %27 = vector.shape_cast %26 : vector<1x5x5xf32> to vector<5x5xf32>
    %28 = vector.shape_cast %25 : vector<5x5xf32> to vector<1x5x5xf32>
    tpu.vector_store %arg2[%c0_24, %c0_25, %c0_26], %28 {strides = array<i32>} : memref<1x5x5xf32, #tpu.memory_space<vmem>>, vector<1x5x5xf32>,
    return
  }
  func.func @transform_0(%arg0: i32) -> (i32, i32, i32) {
    %c0_i32 = arith.constant 0 : i32
    %c0_i32_0 = arith.constant 0 : i32
    %c0_i32_1 = arith.constant 0 : i32
    return %arg0, %c0_i32, %c0_i32_0 : i32, i32, i32
  }
  func.func @transform_1(%arg0: i32) -> (i32, i32, i32) {
    %c0_i32 = arith.constant 0 : i32
    %c0_i32_0 = arith.constant 0 : i32
    %c0_i32_1 = arith.constant 0 : i32
    return %arg0, %c0_i32, %c0_i32_0 : i32, i32, i32
  }
}

module attributes {stable_mosaic.version = 11 : i64} {
  func.func @_matmul_bias_act_kernel(%arg0: i32, %arg1: memref<8x36xbf16, #tpu.memory_space<vmem>>, %arg2: memref<36x128xbf16, #tpu.memory_space<vmem>>, %arg3: memref<8x1xf32, #tpu.memory_space<vmem>>, %arg4: memref<8x128xf32, #tpu.memory_space<vmem>>) attributes {dimension_semantics = [#tpu.dimension_semantics<parallel>], iteration_bounds = array<i64: 1>, scalar_prefetch = 0 : i64, scratch_operands = 0 : i64, tpu.core_type = #tpu.core_type<tc>, window_params = [{pipeline_mode = #tpu.pipeline_mode<synchronous>, transform_indices = @transform_0, window_bounds = array<i64: 8, 36>}, {transform_indices = @transform_1, window_bounds = array<i64: 36, 128>}, {pipeline_mode = #tpu.pipeline_mode<synchronous>, transform_indices = @transform_2, window_bounds = array<i64: 8, 1>}, {transform_indices = @transform_3, window_bounds = array<i64: 8, 128>}]} {
    %c0 = arith.constant 0 : index
    %c0_0 = arith.constant 0 : index
    %0 = vector.load %arg1[%c0, %c0_0] : memref<8x36xbf16, #tpu.memory_space<vmem>>, vector<8x36xbf16>
    %c0_1 = arith.constant 0 : index
    %c0_2 = arith.constant 0 : index
    %1 = vector.load %arg2[%c0_1, %c0_2] : memref<36x128xbf16, #tpu.memory_space<vmem>>, vector<36x128xbf16>
    %cst = arith.constant dense<0.000000e+00> : vector<8x128xf32>
    %2 = tpu.matmul %0, %1, %cst {dimension_numbers = #tpu.dot_dimension_numbers<[1], [0], [0], [1], [0, 0, 1, 1], [], []>} : vector<8x36xbf16>, vector<36x128xbf16>, vector<8x128xf32> -> vector<8x128xf32>
    %c0_3 = arith.constant 0 : index
    %c0_4 = arith.constant 0 : index
    %3 = vector.load %arg3[%c0_3, %c0_4] : memref<8x1xf32, #tpu.memory_space<vmem>>, vector<8x1xf32>
    %4 = vector.broadcast %3 : vector<8x1xf32> to vector<8x128xf32>
    %5 = arith.addf %2, %4 : vector<8x128xf32>
    %c0_5 = arith.constant 0 : index
    %c0_6 = arith.constant 0 : index
    %6 = vector.load %arg4[%c0_5, %c0_6] : memref<8x128xf32, #tpu.memory_space<vmem>>, vector<8x128xf32>
    tpu.vector_store %arg4[%c0_5, %c0_6], %5 {strides = array<i32>} : memref<8x128xf32, #tpu.memory_space<vmem>>, vector<8x128xf32>,
    return
  }
  func.func @transform_0(%arg0: i32) -> (i32, i32) {
    %c0_i32 = arith.constant 0 : i32
    %c0_i32_0 = arith.constant 0 : i32
    %c0_i32_1 = arith.constant 0 : i32
    return %c0_i32, %c0_i32_0 : i32, i32
  }
  func.func @transform_1(%arg0: i32) -> (i32, i32) {
    %c0_i32 = arith.constant 0 : i32
    %c0_i32_0 = arith.constant 0 : i32
    return %c0_i32, %arg0 : i32, i32
  }
  func.func @transform_2(%arg0: i32) -> (i32, i32) {
    %c0_i32 = arith.constant 0 : i32
    %c0_i32_0 = arith.constant 0 : i32
    %c0_i32_1 = arith.constant 0 : i32
    return %c0_i32, %c0_i32_0 : i32, i32
  }
  func.func @transform_3(%arg0: i32) -> (i32, i32) {
    %c0_i32 = arith.constant 0 : i32
    %c0_i32_0 = arith.constant 0 : i32
    return %c0_i32, %arg0 : i32, i32
  }
}

module attributes {stable_mosaic.version = 11 : i64} {
  func.func @_pool_windows_kernel(%arg0: i32, %arg1: memref<1x82x82xf32, #tpu.memory_space<vmem>>, %arg2: memref<1x1x1xf32, #tpu.memory_space<vmem>>) attributes {dimension_semantics = [#tpu.dimension_semantics<parallel>], iteration_bounds = array<i64: 16>, scalar_prefetch = 0 : i64, scratch_operands = 0 : i64, tpu.core_type = #tpu.core_type<tc>, window_params = [{transform_indices = @transform_0, window_bounds = array<i64: 1, 82, 82>}, {transform_indices = @transform_1, window_bounds = array<i64: 1, 1, 1>}]} {
    %c0 = arith.constant 0 : index
    %c0_0 = arith.constant 0 : index
    %c0_1 = arith.constant 0 : index
    %0 = vector.load %arg1[%c0, %c0_0, %c0_1] : memref<1x82x82xf32, #tpu.memory_space<vmem>>, vector<1x82x82xf32>
    %1 = vector.shape_cast %0 : vector<1x82x82xf32> to vector<82x82xf32>
    %cst = arith.constant dense<0xFF800000> : vector<82xf32>
    %2 = vector.multi_reduction <maximumf>, %1, %cst [1] : vector<82x82xf32> to vector<82xf32>
    %3 = vector.shape_cast %2 : vector<82xf32> to vector<82x1xf32>
    %cst_2 = arith.constant dense<0xFF800000> : vector<1xf32>
    %4 = vector.multi_reduction <maximumf>, %3, %cst_2 [0] : vector<82x1xf32> to vector<1xf32>
    %5 = vector.shape_cast %4 : vector<1xf32> to vector<1x1xf32>
    %c0_3 = arith.constant 0 : index
    %c0_4 = arith.constant 0 : index
    %c0_5 = arith.constant 0 : index
    %6 = vector.load %arg2[%c0_3, %c0_4, %c0_5] : memref<1x1x1xf32, #tpu.memory_space<vmem>>, vector<1x1x1xf32>
    %7 = vector.shape_cast %6 : vector<1x1x1xf32> to vector<1x1xf32>
    %8 = vector.shape_cast %5 : vector<1x1xf32> to vector<1x1x1xf32>
    tpu.vector_store %arg2[%c0_3, %c0_4, %c0_5], %8 {strides = array<i32>} : memref<1x1x1xf32, #tpu.memory_space<vmem>>, vector<1x1x1xf32>,
    return
  }
  func.func @transform_0(%arg0: i32) -> (i32, i32, i32) {
    %c0_i32 = arith.constant 0 : i32
    %c0_i32_0 = arith.constant 0 : i32
    %c0_i32_1 = arith.constant 0 : i32
    return %arg0, %c0_i32, %c0_i32_0 : i32, i32, i32
  }
  func.func @transform_1(%arg0: i32) -> (i32, i32, i32) {
    %c0_i32 = arith.constant 0 : i32
    %c0_i32_0 = arith.constant 0 : i32
    %c0_i32_1 = arith.constant 0 : i32
    return %arg0, %c0_i32, %c0_i32_0 : i32, i32, i32
  }
}

module attributes {stable_mosaic.version = 11 : i64} {
  func.func @_pool_windows_kernel(%arg0: i32, %arg1: memref<1x82x82xf32, #tpu.memory_space<vmem>>, %arg2: memref<1x2x2xf32, #tpu.memory_space<vmem>>) attributes {dimension_semantics = [#tpu.dimension_semantics<parallel>], iteration_bounds = array<i64: 16>, scalar_prefetch = 0 : i64, scratch_operands = 0 : i64, tpu.core_type = #tpu.core_type<tc>, window_params = [{transform_indices = @transform_0, window_bounds = array<i64: 1, 82, 82>}, {transform_indices = @transform_1, window_bounds = array<i64: 1, 2, 2>}]} {
    %c0 = arith.constant 0 : index
    %c0_0 = arith.constant 0 : index
    %c0_1 = arith.constant 0 : index
    %0 = vector.load %arg1[%c0, %c0_0, %c0_1] : memref<1x82x82xf32, #tpu.memory_space<vmem>>, vector<1x41x41xf32>
    %1 = vector.shape_cast %0 : vector<1x41x41xf32> to vector<41x41xf32>
    %cst = arith.constant dense<0xFF800000> : vector<41xf32>
    %2 = vector.multi_reduction <maximumf>, %1, %cst [1] : vector<41x41xf32> to vector<41xf32>
    %3 = vector.shape_cast %2 : vector<41xf32> to vector<41x1xf32>
    %cst_2 = arith.constant dense<0xFF800000> : vector<1xf32>
    %4 = vector.multi_reduction <maximumf>, %3, %cst_2 [0] : vector<41x1xf32> to vector<1xf32>
    %5 = vector.shape_cast %4 : vector<1xf32> to vector<1x1xf32>
    %c0_3 = arith.constant 0 : index
    %c0_4 = arith.constant 0 : index
    %c41 = arith.constant 41 : index
    %6 = vector.load %arg1[%c0_3, %c0_4, %c41] : memref<1x82x82xf32, #tpu.memory_space<vmem>>, vector<1x41x41xf32>
    %7 = vector.shape_cast %6 : vector<1x41x41xf32> to vector<41x41xf32>
    %cst_5 = arith.constant dense<0xFF800000> : vector<41xf32>
    %8 = vector.multi_reduction <maximumf>, %7, %cst_5 [1] : vector<41x41xf32> to vector<41xf32>
    %9 = vector.shape_cast %8 : vector<41xf32> to vector<41x1xf32>
    %cst_6 = arith.constant dense<0xFF800000> : vector<1xf32>
    %10 = vector.multi_reduction <maximumf>, %9, %cst_6 [0] : vector<41x1xf32> to vector<1xf32>
    %11 = vector.shape_cast %10 : vector<1xf32> to vector<1x1xf32>
    %12 = tpu.concatenate %5, %11 in 1 : vector<1x1xf32>, vector<1x1xf32> -> vector<1x2xf32>
    %c0_7 = arith.constant 0 : index
    %c41_8 = arith.constant 41 : index
    %c0_9 = arith.constant 0 : index
    %13 = vector.load %arg1[%c0_7, %c41_8, %c0_9] : memref<1x82x82xf32, #tpu.memory_space<vmem>>, vector<1x41x41xf32>
    %14 = vector.shape_cast %13 : vector<1x41x41xf32> to vector<41x41xf32>
    %cst_10 = arith.constant dense<0xFF800000> : vector<41xf32>
    %15 = vector.multi_reduction <maximumf>, %14, %cst_10 [1] : vector<41x41xf32> to vector<41xf32>
    %16 = vector.shape_cast %15 : vector<41xf32> to vector<41x1xf32>
    %cst_11 = arith.constant dense<0xFF800000> : vector<1xf32>
    %17 = vector.multi_reduction <maximumf>, %16, %cst_11 [0] : vector<41x1xf32> to vector<1xf32>
    %18 = vector.shape_cast %17 : vector<1xf32> to vector<1x1xf32>
    %c0_12 = arith.constant 0 : index
    %c41_13 = arith.constant 41 : index
    %c41_14 = arith.constant 41 : index
    %19 = vector.load %arg1[%c0_12, %c41_13, %c41_14] : memref<1x82x82xf32, #tpu.memory_space<vmem>>, vector<1x41x41xf32>
    %20 = vector.shape_cast %19 : vector<1x41x41xf32> to vector<41x41xf32>
    %cst_15 = arith.constant dense<0xFF800000> : vector<41xf32>
    %21 = vector.multi_reduction <maximumf>, %20, %cst_15 [1] : vector<41x41xf32> to vector<41xf32>
    %22 = vector.shape_cast %21 : vector<41xf32> to vector<41x1xf32>
    %cst_16 = arith.constant dense<0xFF800000> : vector<1xf32>
    %23 = vector.multi_reduction <maximumf>, %22, %cst_16 [0] : vector<41x1xf32> to vector<1xf32>
    %24 = vector.shape_cast %23 : vector<1xf32> to vector<1x1xf32>
    %25 = tpu.concatenate %18, %24 in 1 : vector<1x1xf32>, vector<1x1xf32> -> vector<1x2xf32>
    %26 = tpu.concatenate %12, %25 in 0 : vector<1x2xf32>, vector<1x2xf32> -> vector<2x2xf32>
    %c0_17 = arith.constant 0 : index
    %c0_18 = arith.constant 0 : index
    %c0_19 = arith.constant 0 : index
    %27 = vector.load %arg2[%c0_17, %c0_18, %c0_19] : memref<1x2x2xf32, #tpu.memory_space<vmem>>, vector<1x2x2xf32>
    %28 = vector.shape_cast %27 : vector<1x2x2xf32> to vector<2x2xf32>
    %29 = vector.shape_cast %26 : vector<2x2xf32> to vector<1x2x2xf32>
    tpu.vector_store %arg2[%c0_17, %c0_18, %c0_19], %29 {strides = array<i32>} : memref<1x2x2xf32, #tpu.memory_space<vmem>>, vector<1x2x2xf32>,
    return
  }
  func.func @transform_0(%arg0: i32) -> (i32, i32, i32) {
    %c0_i32 = arith.constant 0 : i32
    %c0_i32_0 = arith.constant 0 : i32
    %c0_i32_1 = arith.constant 0 : i32
    return %arg0, %c0_i32, %c0_i32_0 : i32, i32, i32
  }
  func.func @transform_1(%arg0: i32) -> (i32, i32, i32) {
    %c0_i32 = arith.constant 0 : i32
    %c0_i32_0 = arith.constant 0 : i32
    %c0_i32_1 = arith.constant 0 : i32
    return %arg0, %c0_i32, %c0_i32_0 : i32, i32, i32
  }
}

module attributes {stable_mosaic.version = 11 : i64} {
  func.func @_pool_windows_kernel(%arg0: i32, %arg1: memref<1x82x82xf32, #tpu.memory_space<vmem>>, %arg2: memref<1x4x4xf32, #tpu.memory_space<vmem>>) attributes {dimension_semantics = [#tpu.dimension_semantics<parallel>], iteration_bounds = array<i64: 16>, scalar_prefetch = 0 : i64, scratch_operands = 0 : i64, tpu.core_type = #tpu.core_type<tc>, window_params = [{transform_indices = @transform_0, window_bounds = array<i64: 1, 82, 82>}, {transform_indices = @transform_1, window_bounds = array<i64: 1, 4, 4>}]} {
    %c0 = arith.constant 0 : index
    %c0_0 = arith.constant 0 : index
    %c0_1 = arith.constant 0 : index
    %0 = vector.load %arg1[%c0, %c0_0, %c0_1] : memref<1x82x82xf32, #tpu.memory_space<vmem>>, vector<1x21x21xf32>
    %1 = vector.shape_cast %0 : vector<1x21x21xf32> to vector<21x21xf32>
    %cst = arith.constant dense<0xFF800000> : vector<21xf32>
    %2 = vector.multi_reduction <maximumf>, %1, %cst [1] : vector<21x21xf32> to vector<21xf32>
    %3 = vector.shape_cast %2 : vector<21xf32> to vector<21x1xf32>
    %cst_2 = arith.constant dense<0xFF800000> : vector<1xf32>
    %4 = vector.multi_reduction <maximumf>, %3, %cst_2 [0] : vector<21x1xf32> to vector<1xf32>
    %5 = vector.shape_cast %4 : vector<1xf32> to vector<1x1xf32>
    %c0_3 = arith.constant 0 : index
    %c0_4 = arith.constant 0 : index
    %c20 = arith.constant 20 : index
    %6 = vector.load %arg1[%c0_3, %c0_4, %c20] : memref<1x82x82xf32, #tpu.memory_space<vmem>>, vector<1x21x21xf32>
    %7 = vector.shape_cast %6 : vector<1x21x21xf32> to vector<21x21xf32>
    %cst_5 = arith.constant dense<0xFF800000> : vector<21xf32>
    %8 = vector.multi_reduction <maximumf>, %7, %cst_5 [1] : vector<21x21xf32> to vector<21xf32>
    %9 = vector.shape_cast %8 : vector<21xf32> to vector<21x1xf32>
    %cst_6 = arith.constant dense<0xFF800000> : vector<1xf32>
    %10 = vector.multi_reduction <maximumf>, %9, %cst_6 [0] : vector<21x1xf32> to vector<1xf32>
    %11 = vector.shape_cast %10 : vector<1xf32> to vector<1x1xf32>
    %c0_7 = arith.constant 0 : index
    %c0_8 = arith.constant 0 : index
    %c40 = arith.constant 40 : index
    %12 = vector.load %arg1[%c0_7, %c0_8, %c40] : memref<1x82x82xf32, #tpu.memory_space<vmem>>, vector<1x21x21xf32>
    %13 = vector.shape_cast %12 : vector<1x21x21xf32> to vector<21x21xf32>
    %cst_9 = arith.constant dense<0xFF800000> : vector<21xf32>
    %14 = vector.multi_reduction <maximumf>, %13, %cst_9 [1] : vector<21x21xf32> to vector<21xf32>
    %15 = vector.shape_cast %14 : vector<21xf32> to vector<21x1xf32>
    %cst_10 = arith.constant dense<0xFF800000> : vector<1xf32>
    %16 = vector.multi_reduction <maximumf>, %15, %cst_10 [0] : vector<21x1xf32> to vector<1xf32>
    %17 = vector.shape_cast %16 : vector<1xf32> to vector<1x1xf32>
    %c0_11 = arith.constant 0 : index
    %c0_12 = arith.constant 0 : index
    %c60 = arith.constant 60 : index
    %18 = vector.load %arg1[%c0_11, %c0_12, %c60] : memref<1x82x82xf32, #tpu.memory_space<vmem>>, vector<1x21x21xf32>
    %19 = vector.shape_cast %18 : vector<1x21x21xf32> to vector<21x21xf32>
    %cst_13 = arith.constant dense<0xFF800000> : vector<21xf32>
    %20 = vector.multi_reduction <maximumf>, %19, %cst_13 [1] : vector<21x21xf32> to vector<21xf32>
    %21 = vector.shape_cast %20 : vector<21xf32> to vector<21x1xf32>
    %cst_14 = arith.constant dense<0xFF800000> : vector<1xf32>
    %22 = vector.multi_reduction <maximumf>, %21, %cst_14 [0] : vector<21x1xf32> to vector<1xf32>
    %23 = vector.shape_cast %22 : vector<1xf32> to vector<1x1xf32>
    %24 = tpu.concatenate %5, %11, %17, %23 in 1 : vector<1x1xf32>, vector<1x1xf32>, vector<1x1xf32>, vector<1x1xf32> -> vector<1x4xf32>
    %c0_15 = arith.constant 0 : index
    %c20_16 = arith.constant 20 : index
    %c0_17 = arith.constant 0 : index
    %25 = vector.load %arg1[%c0_15, %c20_16, %c0_17] : memref<1x82x82xf32, #tpu.memory_space<vmem>>, vector<1x21x21xf32>
    %26 = vector.shape_cast %25 : vector<1x21x21xf32> to vector<21x21xf32>
    %cst_18 = arith.constant dense<0xFF800000> : vector<21xf32>
    %27 = vector.multi_reduction <maximumf>, %26, %cst_18 [1] : vector<21x21xf32> to vector<21xf32>
    %28 = vector.shape_cast %27 : vector<21xf32> to vector<21x1xf32>
    %cst_19 = arith.constant dense<0xFF800000> : vector<1xf32>
    %29 = vector.multi_reduction <maximumf>, %28, %cst_19 [0] : vector<21x1xf32> to vector<1xf32>
    %30 = vector.shape_cast %29 : vector<1xf32> to vector<1x1xf32>
    %c0_20 = arith.constant 0 : index
    %c20_21 = arith.constant 20 : index
    %c20_22 = arith.constant 20 : index
    %31 = vector.load %arg1[%c0_20, %c20_21, %c20_22] : memref<1x82x82xf32, #tpu.memory_space<vmem>>, vector<1x21x21xf32>
    %32 = vector.shape_cast %31 : vector<1x21x21xf32> to vector<21x21xf32>
    %cst_23 = arith.constant dense<0xFF800000> : vector<21xf32>
    %33 = vector.multi_reduction <maximumf>, %32, %cst_23 [1] : vector<21x21xf32> to vector<21xf32>
    %34 = vector.shape_cast %33 : vector<21xf32> to vector<21x1xf32>
    %cst_24 = arith.constant dense<0xFF800000> : vector<1xf32>
    %35 = vector.multi_reduction <maximumf>, %34, %cst_24 [0] : vector<21x1xf32> to vector<1xf32>
    %36 = vector.shape_cast %35 : vector<1xf32> to vector<1x1xf32>
    %c0_25 = arith.constant 0 : index
    %c20_26 = arith.constant 20 : index
    %c40_27 = arith.constant 40 : index
    %37 = vector.load %arg1[%c0_25, %c20_26, %c40_27] : memref<1x82x82xf32, #tpu.memory_space<vmem>>, vector<1x21x21xf32>
    %38 = vector.shape_cast %37 : vector<1x21x21xf32> to vector<21x21xf32>
    %cst_28 = arith.constant dense<0xFF800000> : vector<21xf32>
    %39 = vector.multi_reduction <maximumf>, %38, %cst_28 [1] : vector<21x21xf32> to vector<21xf32>
    %40 = vector.shape_cast %39 : vector<21xf32> to vector<21x1xf32>
    %cst_29 = arith.constant dense<0xFF800000> : vector<1xf32>
    %41 = vector.multi_reduction <maximumf>, %40, %cst_29 [0] : vector<21x1xf32> to vector<1xf32>
    %42 = vector.shape_cast %41 : vector<1xf32> to vector<1x1xf32>
    %c0_30 = arith.constant 0 : index
    %c20_31 = arith.constant 20 : index
    %c60_32 = arith.constant 60 : index
    %43 = vector.load %arg1[%c0_30, %c20_31, %c60_32] : memref<1x82x82xf32, #tpu.memory_space<vmem>>, vector<1x21x21xf32>
    %44 = vector.shape_cast %43 : vector<1x21x21xf32> to vector<21x21xf32>
    %cst_33 = arith.constant dense<0xFF800000> : vector<21xf32>
    %45 = vector.multi_reduction <maximumf>, %44, %cst_33 [1] : vector<21x21xf32> to vector<21xf32>
    %46 = vector.shape_cast %45 : vector<21xf32> to vector<21x1xf32>
    %cst_34 = arith.constant dense<0xFF800000> : vector<1xf32>
    %47 = vector.multi_reduction <maximumf>, %46, %cst_34 [0] : vector<21x1xf32> to vector<1xf32>
    %48 = vector.shape_cast %47 : vector<1xf32> to vector<1x1xf32>
    %49 = tpu.concatenate %30, %36, %42, %48 in 1 : vector<1x1xf32>, vector<1x1xf32>, vector<1x1xf32>, vector<1x1xf32> -> vector<1x4xf32>
    %c0_35 = arith.constant 0 : index
    %c40_36 = arith.constant 40 : index
    %c0_37 = arith.constant 0 : index
    %50 = vector.load %arg1[%c0_35, %c40_36, %c0_37] : memref<1x82x82xf32, #tpu.memory_space<vmem>>, vector<1x21x21xf32>
    %51 = vector.shape_cast %50 : vector<1x21x21xf32> to vector<21x21xf32>
    %cst_38 = arith.constant dense<0xFF800000> : vector<21xf32>
    %52 = vector.multi_reduction <maximumf>, %51, %cst_38 [1] : vector<21x21xf32> to vector<21xf32>
    %53 = vector.shape_cast %52 : vector<21xf32> to vector<21x1xf32>
    %cst_39 = arith.constant dense<0xFF800000> : vector<1xf32>
    %54 = vector.multi_reduction <maximumf>, %53, %cst_39 [0] : vector<21x1xf32> to vector<1xf32>
    %55 = vector.shape_cast %54 : vector<1xf32> to vector<1x1xf32>
    %c0_40 = arith.constant 0 : index
    %c40_41 = arith.constant 40 : index
    %c20_42 = arith.constant 20 : index
    %56 = vector.load %arg1[%c0_40, %c40_41, %c20_42] : memref<1x82x82xf32, #tpu.memory_space<vmem>>, vector<1x21x21xf32>
    %57 = vector.shape_cast %56 : vector<1x21x21xf32> to vector<21x21xf32>
    %cst_43 = arith.constant dense<0xFF800000> : vector<21xf32>
    %58 = vector.multi_reduction <maximumf>, %57, %cst_43 [1] : vector<21x21xf32> to vector<21xf32>
    %59 = vector.shape_cast %58 : vector<21xf32> to vector<21x1xf32>
    %cst_44 = arith.constant dense<0xFF800000> : vector<1xf32>
    %60 = vector.multi_reduction <maximumf>, %59, %cst_44 [0] : vector<21x1xf32> to vector<1xf32>
    %61 = vector.shape_cast %60 : vector<1xf32> to vector<1x1xf32>
    %c0_45 = arith.constant 0 : index
    %c40_46 = arith.constant 40 : index
    %c40_47 = arith.constant 40 : index
    %62 = vector.load %arg1[%c0_45, %c40_46, %c40_47] : memref<1x82x82xf32, #tpu.memory_space<vmem>>, vector<1x21x21xf32>
    %63 = vector.shape_cast %62 : vector<1x21x21xf32> to vector<21x21xf32>
    %cst_48 = arith.constant dense<0xFF800000> : vector<21xf32>
    %64 = vector.multi_reduction <maximumf>, %63, %cst_48 [1] : vector<21x21xf32> to vector<21xf32>
    %65 = vector.shape_cast %64 : vector<21xf32> to vector<21x1xf32>
    %cst_49 = arith.constant dense<0xFF800000> : vector<1xf32>
    %66 = vector.multi_reduction <maximumf>, %65, %cst_49 [0] : vector<21x1xf32> to vector<1xf32>
    %67 = vector.shape_cast %66 : vector<1xf32> to vector<1x1xf32>
    %c0_50 = arith.constant 0 : index
    %c40_51 = arith.constant 40 : index
    %c60_52 = arith.constant 60 : index
    %68 = vector.load %arg1[%c0_50, %c40_51, %c60_52] : memref<1x82x82xf32, #tpu.memory_space<vmem>>, vector<1x21x21xf32>
    %69 = vector.shape_cast %68 : vector<1x21x21xf32> to vector<21x21xf32>
    %cst_53 = arith.constant dense<0xFF800000> : vector<21xf32>
    %70 = vector.multi_reduction <maximumf>, %69, %cst_53 [1] : vector<21x21xf32> to vector<21xf32>
    %71 = vector.shape_cast %70 : vector<21xf32> to vector<21x1xf32>
    %cst_54 = arith.constant dense<0xFF800000> : vector<1xf32>
    %72 = vector.multi_reduction <maximumf>, %71, %cst_54 [0] : vector<21x1xf32> to vector<1xf32>
    %73 = vector.shape_cast %72 : vector<1xf32> to vector<1x1xf32>
    %74 = tpu.concatenate %55, %61, %67, %73 in 1 : vector<1x1xf32>, vector<1x1xf32>, vector<1x1xf32>, vector<1x1xf32> -> vector<1x4xf32>
    %c0_55 = arith.constant 0 : index
    %c60_56 = arith.constant 60 : index
    %c0_57 = arith.constant 0 : index
    %75 = vector.load %arg1[%c0_55, %c60_56, %c0_57] : memref<1x82x82xf32, #tpu.memory_space<vmem>>, vector<1x21x21xf32>
    %76 = vector.shape_cast %75 : vector<1x21x21xf32> to vector<21x21xf32>
    %cst_58 = arith.constant dense<0xFF800000> : vector<21xf32>
    %77 = vector.multi_reduction <maximumf>, %76, %cst_58 [1] : vector<21x21xf32> to vector<21xf32>
    %78 = vector.shape_cast %77 : vector<21xf32> to vector<21x1xf32>
    %cst_59 = arith.constant dense<0xFF800000> : vector<1xf32>
    %79 = vector.multi_reduction <maximumf>, %78, %cst_59 [0] : vector<21x1xf32> to vector<1xf32>
    %80 = vector.shape_cast %79 : vector<1xf32> to vector<1x1xf32>
    %c0_60 = arith.constant 0 : index
    %c60_61 = arith.constant 60 : index
    %c20_62 = arith.constant 20 : index
    %81 = vector.load %arg1[%c0_60, %c60_61, %c20_62] : memref<1x82x82xf32, #tpu.memory_space<vmem>>, vector<1x21x21xf32>
    %82 = vector.shape_cast %81 : vector<1x21x21xf32> to vector<21x21xf32>
    %cst_63 = arith.constant dense<0xFF800000> : vector<21xf32>
    %83 = vector.multi_reduction <maximumf>, %82, %cst_63 [1] : vector<21x21xf32> to vector<21xf32>
    %84 = vector.shape_cast %83 : vector<21xf32> to vector<21x1xf32>
    %cst_64 = arith.constant dense<0xFF800000> : vector<1xf32>
    %85 = vector.multi_reduction <maximumf>, %84, %cst_64 [0] : vector<21x1xf32> to vector<1xf32>
    %86 = vector.shape_cast %85 : vector<1xf32> to vector<1x1xf32>
    %c0_65 = arith.constant 0 : index
    %c60_66 = arith.constant 60 : index
    %c40_67 = arith.constant 40 : index
    %87 = vector.load %arg1[%c0_65, %c60_66, %c40_67] : memref<1x82x82xf32, #tpu.memory_space<vmem>>, vector<1x21x21xf32>
    %88 = vector.shape_cast %87 : vector<1x21x21xf32> to vector<21x21xf32>
    %cst_68 = arith.constant dense<0xFF800000> : vector<21xf32>
    %89 = vector.multi_reduction <maximumf>, %88, %cst_68 [1] : vector<21x21xf32> to vector<21xf32>
    %90 = vector.shape_cast %89 : vector<21xf32> to vector<21x1xf32>
    %cst_69 = arith.constant dense<0xFF800000> : vector<1xf32>
    %91 = vector.multi_reduction <maximumf>, %90, %cst_69 [0] : vector<21x1xf32> to vector<1xf32>
    %92 = vector.shape_cast %91 : vector<1xf32> to vector<1x1xf32>
    %c0_70 = arith.constant 0 : index
    %c60_71 = arith.constant 60 : index
    %c60_72 = arith.constant 60 : index
    %93 = vector.load %arg1[%c0_70, %c60_71, %c60_72] : memref<1x82x82xf32, #tpu.memory_space<vmem>>, vector<1x21x21xf32>
    %94 = vector.shape_cast %93 : vector<1x21x21xf32> to vector<21x21xf32>
    %cst_73 = arith.constant dense<0xFF800000> : vector<21xf32>
    %95 = vector.multi_reduction <maximumf>, %94, %cst_73 [1] : vector<21x21xf32> to vector<21xf32>
    %96 = vector.shape_cast %95 : vector<21xf32> to vector<21x1xf32>
    %cst_74 = arith.constant dense<0xFF800000> : vector<1xf32>
    %97 = vector.multi_reduction <maximumf>, %96, %cst_74 [0] : vector<21x1xf32> to vector<1xf32>
    %98 = vector.shape_cast %97 : vector<1xf32> to vector<1x1xf32>
    %99 = tpu.concatenate %80, %86, %92, %98 in 1 : vector<1x1xf32>, vector<1x1xf32>, vector<1x1xf32>, vector<1x1xf32> -> vector<1x4xf32>
    %100 = tpu.concatenate %24, %49, %74, %99 in 0 : vector<1x4xf32>, vector<1x4xf32>, vector<1x4xf32>, vector<1x4xf32> -> vector<4x4xf32>
    %c0_75 = arith.constant 0 : index
    %c0_76 = arith.constant 0 : index
    %c0_77 = arith.constant 0 : index
    %101 = vector.load %arg2[%c0_75, %c0_76, %c0_77] : memref<1x4x4xf32, #tpu.memory_space<vmem>>, vector<1x4x4xf32>
    %102 = vector.shape_cast %101 : vector<1x4x4xf32> to vector<4x4xf32>
    %103 = vector.shape_cast %100 : vector<4x4xf32> to vector<1x4x4xf32>
    tpu.vector_store %arg2[%c0_75, %c0_76, %c0_77], %103 {strides = array<i32>} : memref<1x4x4xf32, #tpu.memory_space<vmem>>, vector<1x4x4xf32>,
    return
  }
  func.func @transform_0(%arg0: i32) -> (i32, i32, i32) {
    %c0_i32 = arith.constant 0 : i32
    %c0_i32_0 = arith.constant 0 : i32
    %c0_i32_1 = arith.constant 0 : i32
    return %arg0, %c0_i32, %c0_i32_0 : i32, i32, i32
  }
  func.func @transform_1(%arg0: i32) -> (i32, i32, i32) {
    %c0_i32 = arith.constant 0 : i32
    %c0_i32_0 = arith.constant 0 : i32
    %c0_i32_1 = arith.constant 0 : i32
    return %arg0, %c0_i32, %c0_i32_0 : i32, i32, i32
  }
}

</mosaic_0001>

<llo_original>
// kernel: single_feature_conv_forward.9
$region0: #{single_feature_conv_forward.9}
  #allocation0 [shape = 'u32[]', space=smem, size = 0x4, offset = 0x4, fixed_abs, tag = 'smem constant byte address 0x4 - core index']
  #allocation1 [shape = 'u32[144,128]{1,0:T(1,128)}', space=vmem, size = 0x12000, scoped, tag = 'internal scratch']
  %s0 = inlined_call_operand.vmem [shape: f32[4,15,15], index: 0, kind: input, shape index: {}]
  %s1 = inlined_call_operand.vmem [shape: f32[4,13,13], index: 1, kind: output, shape index: {}]
  %s2 = sld [smem:[#allocation0]]
  $region37: #{single_feature_conv_forward.9} parent=0
    _
  %s4 = ssub.s32 1, %s2
  %s5 = scalar_select 0, %s4, %s2
  loop: start=0, step=1, limit=6
  $region2: #{single_feature_conv_forward.9} parent=0 // loop_pre_header
    _
  $region3: #{single_feature_conv_forward.9} parent=0 // loop_header
    %s7 = sphi 0, %s11
    %p8 = scmp.ge.s32.totalorder %s7, 6
    %s17 = sphi 0, %s19
    %s20 = sphi 0, %s17
    %s21 = sphi 0, %s20
    %s37 = sphi 0, %s21
    %s43 = sphi 0, %s45
    %s46 = sphi 0, %s43
    %s47 = sphi 0, %s46
    %s63 = sphi 0, %s47
  $region4: #{single_feature_conv_forward.9} parent=0 // loop_header_branch
    %10 = sbr.rel (%p8) target = $region8
  $region5: #{single_feature_conv_forward.9} parent=0 // loop_body
    %s12 = ssub.s32 %s7, 1
    %s13 = ssub.s32 %s7, 2
    %s14 = sadd.s32 %s7, 1
    %s15 = ssub.s32 %s7, %s14
    %p16 = scmp.eq.s32.totalorder %s15, 0
    %s18 = sadd.s32 %s17, 1
    %s19 = scalar_select %p16, %s17, %s18
    %p22 = pneg %p16
    %p23 = scmp.eq.s32.totalorder %s7, 3
    %p24 = por %p22, %p23
    %p25 = scmp.ne.s32.totalorder %s17, %s20
    %p26 = scmp.eq.s32.totalorder %s7, 0
    %p27 = por %p25, %p26
    %p28 = scmp.ne.s32.totalorder %s17, %s20
    %p29 = scmp.eq.s32.totalorder %s12, 3
    %p30 = por %p28, %p29
    %p31 = scmp.ne.s32.totalorder %s20, %s21
    %p32 = scmp.eq.s32.totalorder %s12, 0
    %p33 = por %p31, %p32
    %p34 = scmp.ne.s32.totalorder %s20, %s21
    %p35 = scmp.eq.s32.totalorder %s13, 3
    %p36 = por %p34, %p35
    %p38 = scmp.ne.s32.totalorder %s21, %s37
    %p39 = scmp.eq.s32.totalorder %s13, 0
    %p40 = por %p38, %p39
    %s41 = ssub.s32 %s7, %s14
    %p42 = scmp.eq.s32.totalorder %s41, 0
    %s44 = sadd.s32 %s43, 1
    %s45 = scalar_select %p42, %s43, %s44
    %p48 = pneg %p42
    %p49 = scmp.eq.s32.totalorder %s7, 3
    %p50 = por %p48, %p49
    %p51 = scmp.ne.s32.totalorder %s43, %s46
    %p52 = scmp.eq.s32.totalorder %s7, 0
    %p53 = por %p51, %p52
    %p54 = scmp.ne.s32.totalorder %s43, %s46
    %p55 = scmp.eq.s32.totalorder %s12, 3
    %p56 = por %p54, %p55
    %p57 = scmp.ne.s32.totalorder %s46, %s47
    %p58 = scmp.eq.s32.totalorder %s12, 0
    %p59 = por %p57, %p58
    %p60 = scmp.ne.s32.totalorder %s46, %s47
    %p61 = scmp.eq.s32.totalorder %s13, 3
    %p62 = por %p60, %p61
    %p64 = scmp.ne.s32.totalorder %s47, %s63
    %p65 = scmp.eq.s32.totalorder %s13, 0
    %p66 = por %p64, %p65
    %p67 = scmp.le.s32.totalorder 1, %s7
    %p68 = scmp.lt.s32.totalorder %s7, 5
    %p69 = pnand %p67, %p68
    %p70 = pneg %p69
    // Predicated region
    $region9: #{single_feature_conv_forward.9} parent=5 // pred_check
      _
    $region10: #{single_feature_conv_forward.9} parent=5 // pred_check_branch
      %72 = sbr.rel (%p69) target = $region12
    $region11: #{single_feature_conv_forward.9} parent=5 // pred_region
      %s73 = ssub.s32 %s7, 1
    $region12: #{single_feature_conv_forward.9} parent=5 // pred_fallthru
      _
    %p74 = scmp.lt.s32.totalorder %s7, 4
    // Predicated region
    $region13: #{single_feature_conv_forward.9} parent=5 // pred_check
      %p75 = pneg %p74
    $region14: #{single_feature_conv_forward.9} parent=5 // pred_check_branch
      %77 = sbr.rel (%p75) target = $region16
    $region15: #{single_feature_conv_forward.9} parent=5 // pred_region
      // Predicated region
      $region17: #{single_feature_conv_forward.9} parent=15 // pred_check
        %p78 = pneg %p27
      $region18: #{single_feature_conv_forward.9} parent=15 // pred_check_branch
        %80 = sbr.rel (%p78) target = $region20
      $region19: #{single_feature_conv_forward.9} parent=15 // pred_region
        %p81 = scmp.lt.s32.totalorder %s7, 3
        %s82 = scalar_select %p81, %s7, 3
        %s83 = smul.addr %s82, 2
        %s84 = smul.addr %s83, 8
        %s85 = scalar_lea.vmem %s0, %s84
      $region20: #{single_feature_conv_forward.9} parent=15 // pred_fallthru
        _
    $region16: #{single_feature_conv_forward.9} parent=5 // pred_fallthru
      _
    %p86 = scmp.le.s32.totalorder 1, %s7
    %p87 = scmp.lt.s32.totalorder %s7, 5
    %p88 = pnand %p86, %p87
    %p89 = pneg %p88
    // Predicated region
    $region21: #{single_feature_conv_forward.9} parent=5 // pred_check
      _
    $region22: #{single_feature_conv_forward.9} parent=5 // pred_check_branch
      %91 = sbr.rel (%p88) target = $region24
    $region23: #{single_feature_conv_forward.9} parent=5 // pred_region
      %s92 = ssub.s32 %s7, 1
      %p93 = scmp.lt.s32.totalorder %s12, 3
      %s94 = scalar_select %p93, %s12, 3
      %s95 = smul.addr %s94, 2
      %s96 = smul.addr %s95, 8
      %s97 = scalar_lea.vmem %s0, %s96
      %p98 = pneg %p33
      %p99 = pneg %p30
      %p100 = pneg %p59
      %p101 = pneg %p56
      %p102 = scmp.lt.s32.totalorder %s12, 3
      %s103 = scalar_select %p102, %s12, 3
      %s104 = smul.addr %s103, 2
      %s105 = smul.addr %s104, 8
      %s106 = scalar_lea.vmem %s1, %s105
      %p107 = scmp.lt.s32.totalorder %s12, 3
      %s108 = scalar_select %p107, %s12, 3
      %s109 = smul.addr %s108, 2
      %s110 = smul.addr %s109, 8
      %s111 = scalar_lea.vmem %s0, %s110
      %p112 = scmp.lt.s32.totalorder %s12, 3
      %s113 = scalar_select %p112, %s12, 3
      %s114 = smul.addr %s113, 2
      %s115 = smul.addr %s114, 8
      %s116 = scalar_lea.vmem %s1, %s115
      %v117 = vld [vmem:[%s111] sm:$0xff]
      %v118 = vld [vmem:[%s111 + $0x8] sm:$0x1f]
      %121 = vrot.lane.b32.xlu0 %v117, 127
      %v122 = vpop.permute.xlu0 %121
      %123 = vrot.lane.b32.xlu0 %v118, 127
      %v124 = vpop.permute.xlu0 %123
      %v127 = vmax.f32 %v117, %v122
      %v128 = vmax.f32 %v118, %v124
      %129 = vrot.lane.b32.xlu0 %v117, 126
      %v130 = vpop.permute.xlu0 %129
      %131 = vrot.lane.b32.xlu0 %v118, 126
      %v132 = vpop.permute.xlu0 %131
      %v135 = vmax.f32 %v127, %v130
      %v136 = vmax.f32 %v128, %v132
      %v137 = vld [vmem:[%s111 + $0x1] sm:$0xff]
      %v138 = vld [vmem:[%s111 + $0x9] sm:$0x1f]
      %v139 = vmax.f32 %v135, %v137
      %v140 = vmax.f32 %v136, %v138
      %143 = vrot.lane.b32.xlu0 %v137, 127
      %v144 = vpop.permute.xlu0 %143
      %145 = vrot.lane.b32.xlu0 %v138, 127
      %v146 = vpop.permute.xlu0 %145
      %v149 = vmax.f32 %v139, %v144
      %v150 = vmax.f32 %v140, %v146
      %151 = vrot.lane.b32.xlu0 %v137, 126
      %v152 = vpop.permute.xlu0 %151
      %153 = vrot.lane.b32.xlu0 %v138, 126
      %v154 = vpop.permute.xlu0 %153
      %v157 = vmax.f32 %v149, %v152
      %v158 = vmax.f32 %v150, %v154
      %v159 = vld [vmem:[%s111 + $0x2] sm:$0xff]
      %v160 = vld [vmem:[%s111 + $0xa] sm:$0x1f]
      %v161 = vmax.f32 %v157, %v159
      %v162 = vmax.f32 %v158, %v160
      %165 = vrot.lane.b32.xlu0 %v159, 127
      %v166 = vpop.permute.xlu0 %165
      %167 = vrot.lane.b32.xlu0 %v160, 127
      %v168 = vpop.permute.xlu0 %167
      %v171 = vmax.f32 %v161, %v166
      %v172 = vmax.f32 %v162, %v168
      %173 = vrot.lane.b32.xlu0 %v159, 126
      %v174 = vpop.permute.xlu0 %173
      %175 = vrot.lane.b32.xlu0 %v160, 126
      %v176 = vpop.permute.xlu0 %175
      %v179 = vmax.f32 %v171, %v174
      %v180 = vmax.f32 %v172, %v176
      %vm181 = vcmask 105472
      %182 = vst.msk [vmem:[%s116] sm:$0xff] %vm181, %v179
      %vm183 = vcmask 102400
      %184 = vst.msk [vmem:[%s116 + $0x8] sm:$0x1f] %vm183, %v180
      %p185 = scmp.lt.s32.totalorder %s12, 3
      %s186 = scalar_select %p185, %s12, 3
      %s187 = smul.addr %s186, 2
      %s188 = smul.addr %s187, 8
      %s189 = scalar_lea.vmem %s1, %s188
      // Predicated region
      $region25: #{single_feature_conv_forward.9} parent=23 // pred_check
        %p190 = pneg %p56
      $region26: #{single_feature_conv_forward.9} parent=23 // pred_check_branch
        %192 = sbr.rel (%p190) target = $region28
      $region27: #{single_feature_conv_forward.9} parent=23 // pred_region
        _
      $region28: #{single_feature_conv_forward.9} parent=23 // pred_fallthru
        _
    $region24: #{single_feature_conv_forward.9} parent=5 // pred_fallthru
      _
    %p193 = scmp.le.s32.totalorder 2, %s7
    // Predicated region
    $region29: #{single_feature_conv_forward.9} parent=5 // pred_check
      %p194 = pneg %p193
    $region30: #{single_feature_conv_forward.9} parent=5 // pred_check_branch
      %196 = sbr.rel (%p194) target = $region32
    $region31: #{single_feature_conv_forward.9} parent=5 // pred_region
      %s197 = ssub.s32 %s7, 2
      // Predicated region
      $region33: #{single_feature_conv_forward.9} parent=31 // pred_check
        %p198 = pneg %p62
      $region34: #{single_feature_conv_forward.9} parent=31 // pred_check_branch
        %200 = sbr.rel (%p198) target = $region36
      $region35: #{single_feature_conv_forward.9} parent=31 // pred_region
        %p201 = scmp.lt.s32.totalorder %s13, 3
        %s202 = scalar_select %p201, %s13, 3
        %s203 = smul.addr %s202, 2
        %s204 = smul.addr %s203, 8
        %s205 = scalar_lea.vmem %s1, %s204
      $region36: #{single_feature_conv_forward.9} parent=31 // pred_fallthru
        _
    $region32: #{single_feature_conv_forward.9} parent=5 // pred_fallthru
      _
  $region6: #{single_feature_conv_forward.9} parent=0 // loop_footer
    %s11 = sadd.s32 1, %s7
  $region7: #{single_feature_conv_forward.9} parent=0 // loop_footer_branch
    %6 = sbr.rel target = $region3
  $region8: #{single_feature_conv_forward.9} parent=0 // loop_exit
    _

// kernel: single_feature_conv_forward.8
$region0: #{single_feature_conv_forward.8}
  #allocation0 [shape = 'u32[]', space=smem, size = 0x4, offset = 0x4, fixed_abs, tag = 'smem constant byte address 0x4 - core index']
  #allocation1 [shape = 'u32[144,128]{1,0:T(1,128)}', space=vmem, size = 0x12000, scoped, tag = 'internal scratch']
  %s0 = inlined_call_operand.vmem [shape: bf16[2,25], index: 0, kind: input, shape index: {}]
  %s1 = inlined_call_operand.vmem [shape: bf16[25,384], index: 1, kind: input, shape index: {}]
  %s2 = inlined_call_operand.vmem [shape: f32[2,1], index: 2, kind: input, shape index: {}]
  %s3 = inlined_call_operand.vmem [shape: f32[2,384], index: 3, kind: output, shape index: {}]
  %s4 = sld [smem:[#allocation0]]
  $region22: #{single_feature_conv_forward.8} parent=0
    _
  %s6 = ssub.s32 1, %s4
  %s7 = scalar_select 0, %s6, %s4
  // Predicated region
  $region2: #{single_feature_conv_forward.8} parent=0 // pred_check
    _
  $region3: #{single_feature_conv_forward.8} parent=0 // pred_check_branch
    %9 = sbr.rel (0) target = $region5
  $region4: #{single_feature_conv_forward.8} parent=0 // pred_region
    _
  $region5: #{single_feature_conv_forward.8} parent=0 // pred_fallthru
    _
  // Predicated region
  $region6: #{single_feature_conv_forward.8} parent=0 // pred_check
    _
  $region7: #{single_feature_conv_forward.8} parent=0 // pred_check_branch
    %11 = sbr.rel (0) target = $region9
  $region8: #{single_feature_conv_forward.8} parent=0 // pred_region
    _
  $region9: #{single_feature_conv_forward.8} parent=0 // pred_fallthru
    _
  // Predicated region
  $region10: #{single_feature_conv_forward.8} parent=0 // pred_check
    _
  $region11: #{single_feature_conv_forward.8} parent=0 // pred_check_branch
    %13 = sbr.rel (0) target = $region13
  $region12: #{single_feature_conv_forward.8} parent=0 // pred_region
    _
  $region13: #{single_feature_conv_forward.8} parent=0 // pred_fallthru
    _
  %v15 = vld [vmem:[%s0] sm:$0x1]
  %v16 = vld [vmem:[%s1] sm:$0xff]
  %v17 = vld [vmem:[%s1 + $0x8] sm:$0xf]
  %v18 = vld [vmem:[%s1 + $0xc] sm:$0xff]
  %v19 = vld [vmem:[%s1 + $0x14] sm:$0xf]
  %v20 = vld [vmem:[%s1 + $0x18] sm:$0xff]
  %v21 = vld [vmem:[%s1 + $0x20] sm:$0xf]
  %v22 = vld [vmem:[%s1 + $0x24] sm:$0x11]
  %v23 = vld [vmem:[%s1 + $0x2c] sm:$0x1]
  %v24 = vld [vmem:[%s2] sm:$0x3]
  %26 = vset.pattern.permute.xlu0 0
  %27 = vperm.xlu0 %26, %v24
  %v28 = vpop.permute.xlu0 %27
  %v38 = vunpack.c.l.b16 %v16
  %v39 = vunpack.c.h.b16 %v16
  %v40 = vunpack.c.l.b16 %v17
  %v41 = vunpack.c.l.b16 %v18
  %v42 = vunpack.c.h.b16 %v18
  %v43 = vunpack.c.l.b16 %v19
  %v44 = vunpack.c.l.b16 %v20
  %v45 = vunpack.c.h.b16 %v20
  %v46 = vunpack.c.l.b16 %v21
  %v47 = vunpack.c.l.b16 %v22
  %v48 = vunpack.c.h.b16 %v22
  %v49 = vunpack.c.l.b16 %v23
  %v50 = vpack.c.b16 %v41, %v38
  %v51 = vpack.c.b16 %v42, %v39
  %v52 = vpack.c.b16 %v43, %v40
  %v53 = vpack.c.b16 %v47, %v44
  %v54 = vpack.c.b16 %v48, %v45
  %v55 = vpack.c.b16 %v49, %v46
  %vm59 = vcmask 203776
  %v61 = vsel %vm59, %v15, 0
  %vm63 = vcmask 1043456
  %vm64 = vcmask 1044480
  %v65 = vsel %vm63, 4294967295, 65535
  %v66 = vsel %vm64, %v65, 0
  %v68 = vand.u32 %v53, %v66
  %v71 = vand.u32 %v54, %v66
  %v74 = vand.u32 %v55, %v66
  %76 = vmatprep.subr.bf16.mxu0 %v51
  %77 = vmatpush1.bf16.msra.mxu0 %v50
  %78 = vmatprep.subr.bf16.mxu0 %v71
  %79 = vmatpush1.bf16.msra.mxu0 %v68
  %80 = vmatprep.subr.bf16.mxu0 0
  %81 = vmatpush1.bf16.msra.mxu0 0
  %82 = vmatprep.subr.bf16.mxu0 0
  %83 = vmatpush1.bf16.msra.mxu0 0
  %84 = vmatprep.subr.bf16.mxu0 0
  %85 = vmatpush1.bf16.msra.mxu0 0
  %86 = vmatprep.subr.bf16.mxu0 0
  %87 = vmatpush1.bf16.msra.mxu0 0
  %88 = vmatprep.subr.bf16.mxu0 0
  %89 = vmatpush1.bf16.msra.mxu0 0
  %90 = vmatprep.subr.bf16.mxu0 0
  %91 = vmatpush1.bf16.msra.mxu0 0
  %92 = vmatprep.subr.bf16.mxu0 0
  %93 = vmatpush1.bf16.msra.mxu0 0
  %94 = vmatprep.subr.bf16.mxu0 0
  %95 = vmatpush1.bf16.msra.mxu0 0
  %96 = vmatprep.subr.bf16.mxu0 0
  %97 = vmatpush1.bf16.msra.mxu0 0
  %98 = vmatprep.subr.bf16.mxu0 0
  %99 = vmatpush1.bf16.msra.mxu0 0
  %100 = vmatprep.subr.bf16.mxu0 0
  %101 = vmatpush1.bf16.msra.mxu0 0
  %102 = vmatprep.subr.bf16.mxu0 0
  %103 = vmatpush1.bf16.msra.mxu0 0
  %104 = vmatprep.subr.bf16.mxu0 0
  %105 = vmatpush1.bf16.msra.mxu0 0
  %106 = vmatprep.subr.bf16.mxu0 0
  %107 = vmatpush1.bf16.msra.mxu0 0
  %108 = vmatprep.mubr.bf16.mxu0 0
  %109 = vmatmul.mubr.bf16.gmra.mrb[0].mxu0 %v61
  %v110 = vpop.f32.mrb[0].mxu0
  %v111 = vadd.f32 %v28, %v110
  %v112 = vpop.f32.mrb[0].mxu0
  %v113 = vadd.f32 %v28, %v112
  %v114 = vpop.f32.mrb[0].mxu0
  %v115 = vpop.f32.mrb[0].mxu0
  %116 = vdwg.mxu0
  %117 = vmatprep.subr.bf16.mxu0 0
  %118 = vmatpush1.bf16.msra.mxu0 %v52
  %119 = vmatprep.subr.bf16.mxu0 0
  %120 = vmatpush1.bf16.msra.mxu0 %v74
  %121 = vmatprep.subr.bf16.mxu0 0
  %122 = vmatpush1.bf16.msra.mxu0 0
  %123 = vmatprep.subr.bf16.mxu0 0
  %124 = vmatpush1.bf16.msra.mxu0 0
  %125 = vmatprep.subr.bf16.mxu0 0
  %126 = vmatpush1.bf16.msra.mxu0 0
  %127 = vmatprep.subr.bf16.mxu0 0
  %128 = vmatpush1.bf16.msra.mxu0 0
  %129 = vmatprep.subr.bf16.mxu0 0
  %130 = vmatpush1.bf16.msra.mxu0 0
  %131 = vmatprep.subr.bf16.mxu0 0
  %132 = vmatpush1.bf16.msra.mxu0 0
  %133 = vmatprep.subr.bf16.mxu0 0
  %134 = vmatpush1.bf16.msra.mxu0 0
  %135 = vmatprep.subr.bf16.mxu0 0
  %136 = vmatpush1.bf16.msra.mxu0 0
  %137 = vmatprep.subr.bf16.mxu0 0
  %138 = vmatpush1.bf16.msra.mxu0 0
  %139 = vmatprep.subr.bf16.mxu0 0
  %140 = vmatpush1.bf16.msra.mxu0 0
  %141 = vmatprep.subr.bf16.mxu0 0
  %142 = vmatpush1.bf16.msra.mxu0 0
  %143 = vmatprep.subr.bf16.mxu0 0
  %144 = vmatpush1.bf16.msra.mxu0 0
  %145 = vmatprep.subr.bf16.mxu0 0
  %146 = vmatpush1.bf16.msra.mxu0 0
  %147 = vmatprep.subr.bf16.mxu0 0
  %148 = vmatpush1.bf16.msra.mxu0 0
  %149 = vmatprep.mubr.bf16.mxu0 0
  %150 = vmatmul.mubr.bf16.gmra.mrb[0].mxu0 %v61
  %v151 = vpop.f32.mrb[0].mxu0
  %v152 = vadd.f32 %v28, %v151
  %v153 = vpop.f32.mrb[0].mxu0
  %v154 = vpop.f32.mrb[0].mxu0
  %v155 = vpop.f32.mrb[0].mxu0
  %156 = vdwg.mxu0
  %v157 = vmax.f32 %v111, 0.0
  %v158 = vmax.f32 %v113, 0.0
  %v159 = vmax.f32 %v152, 0.0
  %v163 = vcombine.low %v157, %v158
  %v165 = vunpack.c.l.s4 1983009808
  %v166 = vunpack.c.0.s8 %v165
  %v167 = vlaneseq
  %v168 = vshrl.u32 %v167, 7
  %v169 = vsub.s32 %v166, %v168
  %v170 = vrot.slane %v163, %v169
  %v172 = vunpack.c.l.s4 1983009808
  %v173 = vunpack.c.0.s8 %v172
  %v174 = vlaneseq
  %v175 = vshrl.u32 %v174, 7
  %v176 = vsub.s32 %v173, %v175
  %v177 = vrot.slane %v159, %v176
  %v178 = vcombine.low %v170, %v177
  %180 = vst [vmem:[%s3] sm:$0x3f] %v178
  // Predicated region
  $region14: #{single_feature_conv_forward.8} parent=0 // pred_check
    _
  $region15: #{single_feature_conv_forward.8} parent=0 // pred_check_branch
    %182 = sbr.rel (0) target = $region17
  $region16: #{single_feature_conv_forward.8} parent=0 // pred_region
    _
  $region17: #{single_feature_conv_forward.8} parent=0 // pred_fallthru
    _
  // Predicated region
  $region18: #{single_feature_conv_forward.8} parent=0 // pred_check
    _
  $region19: #{single_feature_conv_forward.8} parent=0 // pred_check_branch
    %184 = sbr.rel (0) target = $region21
  $region20: #{single_feature_conv_forward.8} parent=0 // pred_region
    _
  $region21: #{single_feature_conv_forward.8} parent=0 // pred_fallthru
    _

// kernel: single_feature_conv_forward.10
$region0: #{single_feature_conv_forward.10}
  #allocation0 [shape = 'u32[]', space=smem, size = 0x4, offset = 0x4, fixed_abs, tag = 'smem constant byte address 0x4 - core index']
  #allocation1 [shape = 'u32[144,128]{1,0:T(1,128)}', space=vmem, size = 0x12000, scoped, tag = 'internal scratch']
  %s0 = inlined_call_operand.vmem [shape: bf16[4,50], index: 0, kind: input, shape index: {}]
  %s1 = inlined_call_operand.vmem [shape: bf16[50,128], index: 1, kind: input, shape index: {}]
  %s2 = inlined_call_operand.vmem [shape: f32[4,1], index: 2, kind: input, shape index: {}]
  %s3 = inlined_call_operand.vmem [shape: f32[4,128], index: 3, kind: output, shape index: {}]
  %s4 = sld [smem:[#allocation0]]
  $region22: #{single_feature_conv_forward.10} parent=0
    _
  %s6 = ssub.s32 1, %s4
  %s7 = scalar_select 0, %s6, %s4
  // Predicated region
  $region2: #{single_feature_conv_forward.10} parent=0 // pred_check
    _
  $region3: #{single_feature_conv_forward.10} parent=0 // pred_check_branch
    %9 = sbr.rel (0) target = $region5
  $region4: #{single_feature_conv_forward.10} parent=0 // pred_region
    _
  $region5: #{single_feature_conv_forward.10} parent=0 // pred_fallthru
    _
  // Predicated region
  $region6: #{single_feature_conv_forward.10} parent=0 // pred_check
    _
  $region7: #{single_feature_conv_forward.10} parent=0 // pred_check_branch
    %11 = sbr.rel (0) target = $region9
  $region8: #{single_feature_conv_forward.10} parent=0 // pred_region
    _
  $region9: #{single_feature_conv_forward.10} parent=0 // pred_fallthru
    _
  // Predicated region
  $region10: #{single_feature_conv_forward.10} parent=0 // pred_check
    _
  $region11: #{single_feature_conv_forward.10} parent=0 // pred_check_branch
    %13 = sbr.rel (0) target = $region13
  $region12: #{single_feature_conv_forward.10} parent=0 // pred_region
    _
  $region13: #{single_feature_conv_forward.10} parent=0 // pred_fallthru
    _
  %v15 = vld [vmem:[%s0] sm:$0x3]
  %v16 = vld [vmem:[%s1] sm:$0xf]
  %v17 = vld [vmem:[%s1 + $0x4] sm:$0xf]
  %v18 = vld [vmem:[%s1 + $0x8] sm:$0xf]
  %v19 = vld [vmem:[%s1 + $0xc] sm:$0xf]
  %v20 = vld [vmem:[%s1 + $0x10] sm:$0xf]
  %v21 = vld [vmem:[%s1 + $0x14] sm:$0xf]
  %v22 = vld [vmem:[%s1 + $0x18] sm:$0x1]
  %v23 = vld [vmem:[%s2] sm:$0xf]
  %25 = vset.pattern.permute.xlu0 0
  %26 = vperm.xlu0 %25, %v23
  %v27 = vpop.permute.xlu0 %26
  %v36 = vunpack.c.l.b16 %v16
  %v37 = vunpack.c.l.b16 %v17
  %v38 = vunpack.c.l.b16 %v18
  %v39 = vunpack.c.l.b16 %v19
  %v40 = vunpack.c.l.b16 %v20
  %v41 = vunpack.c.l.b16 %v21
  %v42 = vunpack.c.l.b16 %v22
  %v43 = vpack.c.b16 %v37, %v36
  %v44 = vpack.c.b16 %v39, %v38
  %v45 = vpack.c.b16 %v41, %v40
  %v46 = vpack.c.b16 %v42, %v42
  %vm50 = vcmask 408576
  %v52 = vsel %vm50, %v15, 0
  %vm54 = vcmask 1040384
  %v56 = vsel %vm54, %v46, 0
  %58 = vmatprep.subr.bf16.mxu0 0
  %59 = vmatpush1.bf16.msra.mxu0 %v43
  %60 = vmatprep.subr.bf16.mxu0 0
  %61 = vmatpush1.bf16.msra.mxu0 %v44
  %62 = vmatprep.subr.bf16.mxu0 0
  %63 = vmatpush1.bf16.msra.mxu0 %v45
  %64 = vmatprep.subr.bf16.mxu0 0
  %65 = vmatpush1.bf16.msra.mxu0 %v56
  %66 = vmatprep.subr.bf16.mxu0 0
  %67 = vmatpush1.bf16.msra.mxu0 0
  %68 = vmatprep.subr.bf16.mxu0 0
  %69 = vmatpush1.bf16.msra.mxu0 0
  %70 = vmatprep.subr.bf16.mxu0 0
  %71 = vmatpush1.bf16.msra.mxu0 0
  %72 = vmatprep.subr.bf16.mxu0 0
  %73 = vmatpush1.bf16.msra.mxu0 0
  %74 = vmatprep.subr.bf16.mxu0 0
  %75 = vmatpush1.bf16.msra.mxu0 0
  %76 = vmatprep.subr.bf16.mxu0 0
  %77 = vmatpush1.bf16.msra.mxu0 0
  %78 = vmatprep.subr.bf16.mxu0 0
  %79 = vmatpush1.bf16.msra.mxu0 0
  %80 = vmatprep.subr.bf16.mxu0 0
  %81 = vmatpush1.bf16.msra.mxu0 0
  %82 = vmatprep.subr.bf16.mxu0 0
  %83 = vmatpush1.bf16.msra.mxu0 0
  %84 = vmatprep.subr.bf16.mxu0 0
  %85 = vmatpush1.bf16.msra.mxu0 0
  %86 = vmatprep.subr.bf16.mxu0 0
  %87 = vmatpush1.bf16.msra.mxu0 0
  %88 = vmatprep.subr.bf16.mxu0 0
  %89 = vmatpush1.bf16.msra.mxu0 0
  %90 = vmatprep.mubr.bf16.mxu0 0
  %91 = vmatmul.mubr.bf16.gmra.mrb[0].mxu0 %v52
  %v92 = vpop.f32.mrb[0].mxu0
  %v93 = vadd.f32 %v27, %v92
  %v94 = vpop.f32.mrb[0].mxu0
  %v95 = vpop.f32.mrb[0].mxu0
  %v96 = vpop.f32.mrb[0].mxu0
  %97 = vdwg.mxu0
  %v98 = vmax.f32 %v93, 0.0
  %99 = vst [vmem:[%s3] sm:$0xf] %v98
  // Predicated region
  $region14: #{single_feature_conv_forward.10} parent=0 // pred_check
    _
  $region15: #{single_feature_conv_forward.10} parent=0 // pred_check_branch
    %101 = sbr.rel (0) target = $region17
  $region16: #{single_feature_conv_forward.10} parent=0 // pred_region
    _
  $region17: #{single_feature_conv_forward.10} parent=0 // pred_fallthru
    _
  // Predicated region
  $region18: #{single_feature_conv_forward.10} parent=0 // pred_check
    _
  $region19: #{single_feature_conv_forward.10} parent=0 // pred_check_branch
    %103 = sbr.rel (0) target = $region21
  $region20: #{single_feature_conv_forward.10} parent=0 // pred_region
    _
  $region21: #{single_feature_conv_forward.10} parent=0 // pred_fallthru
    _

// kernel: single_feature_conv_forward.11
$region0: #{single_feature_conv_forward.11}
  #allocation0 [shape = 'u32[]', space=smem, size = 0x4, offset = 0x4, fixed_abs, tag = 'smem constant byte address 0x4 - core index']
  #allocation1 [shape = 'u32[144,128]{1,0:T(1,128)}', space=vmem, size = 0x12000, scoped, tag = 'internal scratch']
  %s0 = inlined_call_operand.vmem [shape: f32[8,7,7], index: 0, kind: input, shape index: {}]
  %s1 = inlined_call_operand.vmem [shape: f32[8,5,5], index: 1, kind: output, shape index: {}]
  %s2 = sld [smem:[#allocation0]]
  $region37: #{single_feature_conv_forward.11} parent=0
    _
  %s4 = ssub.s32 1, %s2
  %s5 = scalar_select 0, %s4, %s2
  loop: start=0, step=1, limit=10
  $region2: #{single_feature_conv_forward.11} parent=0 // loop_pre_header
    _
  $region3: #{single_feature_conv_forward.11} parent=0 // loop_header
    %s7 = sphi 0, %s11
    %p8 = scmp.ge.s32.totalorder %s7, 10
    %s17 = sphi 0, %s19
    %s20 = sphi 0, %s17
    %s21 = sphi 0, %s20
    %s37 = sphi 0, %s21
    %s43 = sphi 0, %s45
    %s46 = sphi 0, %s43
    %s47 = sphi 0, %s46
    %s63 = sphi 0, %s47
  $region4: #{single_feature_conv_forward.11} parent=0 // loop_header_branch
    %10 = sbr.rel (%p8) target = $region8
  $region5: #{single_feature_conv_forward.11} parent=0 // loop_body
    %s12 = ssub.s32 %s7, 1
    %s13 = ssub.s32 %s7, 2
    %s14 = sadd.s32 %s7, 1
    %s15 = ssub.s32 %s7, %s14
    %p16 = scmp.eq.s32.totalorder %s15, 0
    %s18 = sadd.s32 %s17, 1
    %s19 = scalar_select %p16, %s17, %s18
    %p22 = pneg %p16
    %p23 = scmp.eq.s32.totalorder %s7, 7
    %p24 = por %p22, %p23
    %p25 = scmp.ne.s32.totalorder %s17, %s20
    %p26 = scmp.eq.s32.totalorder %s7, 0
    %p27 = por %p25, %p26
    %p28 = scmp.ne.s32.totalorder %s17, %s20
    %p29 = scmp.eq.s32.totalorder %s12, 7
    %p30 = por %p28, %p29
    %p31 = scmp.ne.s32.totalorder %s20, %s21
    %p32 = scmp.eq.s32.totalorder %s12, 0
    %p33 = por %p31, %p32
    %p34 = scmp.ne.s32.totalorder %s20, %s21
    %p35 = scmp.eq.s32.totalorder %s13, 7
    %p36 = por %p34, %p35
    %p38 = scmp.ne.s32.totalorder %s21, %s37
    %p39 = scmp.eq.s32.totalorder %s13, 0
    %p40 = por %p38, %p39
    %s41 = ssub.s32 %s7, %s14
    %p42 = scmp.eq.s32.totalorder %s41, 0
    %s44 = sadd.s32 %s43, 1
    %s45 = scalar_select %p42, %s43, %s44
    %p48 = pneg %p42
    %p49 = scmp.eq.s32.totalorder %s7, 7
    %p50 = por %p48, %p49
    %p51 = scmp.ne.s32.totalorder %s43, %s46
    %p52 = scmp.eq.s32.totalorder %s7, 0
    %p53 = por %p51, %p52
    %p54 = scmp.ne.s32.totalorder %s43, %s46
    %p55 = scmp.eq.s32.totalorder %s12, 7
    %p56 = por %p54, %p55
    %p57 = scmp.ne.s32.totalorder %s46, %s47
    %p58 = scmp.eq.s32.totalorder %s12, 0
    %p59 = por %p57, %p58
    %p60 = scmp.ne.s32.totalorder %s46, %s47
    %p61 = scmp.eq.s32.totalorder %s13, 7
    %p62 = por %p60, %p61
    %p64 = scmp.ne.s32.totalorder %s47, %s63
    %p65 = scmp.eq.s32.totalorder %s13, 0
    %p66 = por %p64, %p65
    %p67 = scmp.le.s32.totalorder 1, %s7
    %p68 = scmp.lt.s32.totalorder %s7, 9
    %p69 = pnand %p67, %p68
    %p70 = pneg %p69
    // Predicated region
    $region9: #{single_feature_conv_forward.11} parent=5 // pred_check
      _
    $region10: #{single_feature_conv_forward.11} parent=5 // pred_check_branch
      %72 = sbr.rel (%p69) target = $region12
    $region11: #{single_feature_conv_forward.11} parent=5 // pred_region
      %s73 = ssub.s32 %s7, 1
    $region12: #{single_feature_conv_forward.11} parent=5 // pred_fallthru
      _
    %p74 = scmp.lt.s32.totalorder %s7, 8
    // Predicated region
    $region13: #{single_feature_conv_forward.11} parent=5 // pred_check
      %p75 = pneg %p74
    $region14: #{single_feature_conv_forward.11} parent=5 // pred_check_branch
      %77 = sbr.rel (%p75) target = $region16
    $region15: #{single_feature_conv_forward.11} parent=5 // pred_region
      // Predicated region
      $region17: #{single_feature_conv_forward.11} parent=15 // pred_check
        %p78 = pneg %p27
      $region18: #{single_feature_conv_forward.11} parent=15 // pred_check_branch
        %80 = sbr.rel (%p78) target = $region20
      $region19: #{single_feature_conv_forward.11} parent=15 // pred_region
        %p81 = scmp.lt.s32.totalorder %s7, 7
        %s82 = scalar_select %p81, %s7, 7
        %s83 = smul.addr %s82, 8
        %s84 = scalar_lea.vmem %s0, %s83
      $region20: #{single_feature_conv_forward.11} parent=15 // pred_fallthru
        _
    $region16: #{single_feature_conv_forward.11} parent=5 // pred_fallthru
      _
    %p85 = scmp.le.s32.totalorder 1, %s7
    %p86 = scmp.lt.s32.totalorder %s7, 9
    %p87 = pnand %p85, %p86
    %p88 = pneg %p87
    // Predicated region
    $region21: #{single_feature_conv_forward.11} parent=5 // pred_check
      _
    $region22: #{single_feature_conv_forward.11} parent=5 // pred_check_branch
      %90 = sbr.rel (%p87) target = $region24
    $region23: #{single_feature_conv_forward.11} parent=5 // pred_region
      %s91 = ssub.s32 %s7, 1
      %p92 = scmp.lt.s32.totalorder %s12, 7
      %s93 = scalar_select %p92, %s12, 7
      %s94 = smul.addr %s93, 8
      %s95 = scalar_lea.vmem %s0, %s94
      %p96 = pneg %p33
      %p97 = pneg %p30
      %p98 = pneg %p59
      %p99 = pneg %p56
      %p100 = scmp.lt.s32.totalorder %s12, 7
      %s101 = scalar_select %p100, %s12, 7
      %s102 = smul.addr %s101, 8
      %s103 = scalar_lea.vmem %s1, %s102
      %p104 = scmp.lt.s32.totalorder %s12, 7
      %s105 = scalar_select %p104, %s12, 7
      %s106 = smul.addr %s105, 8
      %s107 = scalar_lea.vmem %s0, %s106
      %p108 = scmp.lt.s32.totalorder %s12, 7
      %s109 = scalar_select %p108, %s12, 7
      %s110 = smul.addr %s109, 8
      %s111 = scalar_lea.vmem %s1, %s110
      %v112 = vld [vmem:[%s107] sm:$0x1f]
      %114 = vrot.lane.b32.xlu0 %v112, 127
      %v115 = vpop.permute.xlu0 %114
      %v117 = vmax.f32 %v112, %v115
      %118 = vrot.lane.b32.xlu0 %v112, 126
      %v119 = vpop.permute.xlu0 %118
      %v121 = vmax.f32 %v117, %v119
      %v122 = vld [vmem:[%s107 + $0x1] sm:$0x1f]
      %v123 = vmax.f32 %v121, %v122
      %125 = vrot.lane.b32.xlu0 %v122, 127
      %v126 = vpop.permute.xlu0 %125
      %v128 = vmax.f32 %v123, %v126
      %129 = vrot.lane.b32.xlu0 %v122, 126
      %v130 = vpop.permute.xlu0 %129
      %v132 = vmax.f32 %v128, %v130
      %v133 = vld [vmem:[%s107 + $0x2] sm:$0x1f]
      %v134 = vmax.f32 %v132, %v133
      %136 = vrot.lane.b32.xlu0 %v133, 127
      %v137 = vpop.permute.xlu0 %136
      %v139 = vmax.f32 %v134, %v137
      %140 = vrot.lane.b32.xlu0 %v133, 126
      %v141 = vpop.permute.xlu0 %140
      %v143 = vmax.f32 %v139, %v141
      %vm144 = vcmask 36864
      %145 = vst.msk [vmem:[%s111] sm:$0x1f] %vm144, %v143
      %p146 = scmp.lt.s32.totalorder %s12, 7
      %s147 = scalar_select %p146, %s12, 7
      %s148 = smul.addr %s147, 8
      %s149 = scalar_lea.vmem %s1, %s148
      // Predicated region
      $region25: #{single_feature_conv_forward.11} parent=23 // pred_check
        %p150 = pneg %p56
      $region26: #{single_feature_conv_forward.11} parent=23 // pred_check_branch
        %152 = sbr.rel (%p150) target = $region28
      $region27: #{single_feature_conv_forward.11} parent=23 // pred_region
        _
      $region28: #{single_feature_conv_forward.11} parent=23 // pred_fallthru
        _
    $region24: #{single_feature_conv_forward.11} parent=5 // pred_fallthru
      _
    %p153 = scmp.le.s32.totalorder 2, %s7
    // Predicated region
    $region29: #{single_feature_conv_forward.11} parent=5 // pred_check
      %p154 = pneg %p153
    $region30: #{single_feature_conv_forward.11} parent=5 // pred_check_branch
      %156 = sbr.rel (%p154) target = $region32
    $region31: #{single_feature_conv_forward.11} parent=5 // pred_region
      %s157 = ssub.s32 %s7, 2
      // Predicated region
      $region33: #{single_feature_conv_forward.11} parent=31 // pred_check
        %p158 = pneg %p62
      $region34: #{single_feature_conv_forward.11} parent=31 // pred_check_branch
        %160 = sbr.rel (%p158) target = $region36
      $region35: #{single_feature_conv_forward.11} parent=31 // pred_region
        %p161 = scmp.lt.s32.totalorder %s13, 7
        %s162 = scalar_select %p161, %s13, 7
        %s163 = smul.addr %s162, 8
        %s164 = scalar_lea.vmem %s1, %s163
      $region36: #{single_feature_conv_forward.11} parent=31 // pred_fallthru
        _
    $region32: #{single_feature_conv_forward.11} parent=5 // pred_fallthru
      _
  $region6: #{single_feature_conv_forward.11} parent=0 // loop_footer
    %s11 = sadd.s32 1, %s7
  $region7: #{single_feature_conv_forward.11} parent=0 // loop_footer_branch
    %6 = sbr.rel target = $region3
  $region8: #{single_feature_conv_forward.11} parent=0 // loop_exit
    _

// kernel: single_feature_conv_forward.12
$region0: #{single_feature_conv_forward.12}
  #allocation0 [shape = 'u32[]', space=smem, size = 0x4, offset = 0x4, fixed_abs, tag = 'smem constant byte address 0x4 - core index']
  #allocation1 [shape = 'u32[144,128]{1,0:T(1,128)}', space=vmem, size = 0x12000, scoped, tag = 'internal scratch']
  %s0 = inlined_call_operand.vmem [shape: bf16[8,36], index: 0, kind: input, shape index: {}]
  %s1 = inlined_call_operand.vmem [shape: bf16[36,128], index: 1, kind: input, shape index: {}]
  %s2 = inlined_call_operand.vmem [shape: f32[8,1], index: 2, kind: input, shape index: {}]
  %s3 = inlined_call_operand.vmem [shape: f32[8,128], index: 3, kind: output, shape index: {}]
  %s4 = sld [smem:[#allocation0]]
  $region22: #{single_feature_conv_forward.12} parent=0
    _
  %s6 = ssub.s32 1, %s4
  %s7 = scalar_select 0, %s6, %s4
  // Predicated region
  $region2: #{single_feature_conv_forward.12} parent=0 // pred_check
    _
  $region3: #{single_feature_conv_forward.12} parent=0 // pred_check_branch
    %9 = sbr.rel (0) target = $region5
  $region4: #{single_feature_conv_forward.12} parent=0 // pred_region
    _
  $region5: #{single_feature_conv_forward.12} parent=0 // pred_fallthru
    _
  // Predicated region
  $region6: #{single_feature_conv_forward.12} parent=0 // pred_check
    _
  $region7: #{single_feature_conv_forward.12} parent=0 // pred_check_branch
    %11 = sbr.rel (0) target = $region9
  $region8: #{single_feature_conv_forward.12} parent=0 // pred_region
    _
  $region9: #{single_feature_conv_forward.12} parent=0 // pred_fallthru
    _
  // Predicated region
  $region10: #{single_feature_conv_forward.12} parent=0 // pred_check
    _
  $region11: #{single_feature_conv_forward.12} parent=0 // pred_check_branch
    %13 = sbr.rel (0) target = $region13
  $region12: #{single_feature_conv_forward.12} parent=0 // pred_region
    _
  $region13: #{single_feature_conv_forward.12} parent=0 // pred_fallthru
    _
  %v15 = vld [vmem:[%s0] sm:$0xf]
  %v16 = vld [vmem:[%s1] sm:$0xf]
  %v17 = vld [vmem:[%s1 + $0x4] sm:$0xf]
  %v18 = vld [vmem:[%s1 + $0x8] sm:$0xf]
  %v19 = vld [vmem:[%s1 + $0xc] sm:$0xf]
  %v20 = vld [vmem:[%s1 + $0x10] sm:$0x3]
  %v21 = vld [vmem:[%s2] sm:$0xff]
  %23 = vset.pattern.permute.xlu0 0
  %24 = vperm.xlu0 %23, %v21
  %v25 = vpop.permute.xlu0 %24
  %v32 = vunpack.c.l.b16 %v16
  %v33 = vunpack.c.l.b16 %v17
  %v34 = vunpack.c.l.b16 %v18
  %v35 = vunpack.c.l.b16 %v19
  %v36 = vunpack.c.l.b16 %v20
  %v37 = vpack.c.b16 %v33, %v32
  %v38 = vpack.c.b16 %v35, %v34
  %v39 = vpack.c.b16 %v36, %v36
  %vm42 = vcmask 293888
  %v44 = vsel %vm42, %v15, 0
  %vm46 = vcmask 1041408
  %v48 = vsel %vm46, %v39, 0
  %50 = vmatprep.subr.bf16.mxu0 0
  %51 = vmatpush1.bf16.msra.mxu0 %v37
  %52 = vmatprep.subr.bf16.mxu0 0
  %53 = vmatpush1.bf16.msra.mxu0 %v38
  %54 = vmatprep.subr.bf16.mxu0 0
  %55 = vmatpush1.bf16.msra.mxu0 %v48
  %56 = vmatprep.subr.bf16.mxu0 0
  %57 = vmatpush1.bf16.msra.mxu0 0
  %58 = vmatprep.subr.bf16.mxu0 0
  %59 = vmatpush1.bf16.msra.mxu0 0
  %60 = vmatprep.subr.bf16.mxu0 0
  %61 = vmatpush1.bf16.msra.mxu0 0
  %62 = vmatprep.subr.bf16.mxu0 0
  %63 = vmatpush1.bf16.msra.mxu0 0
  %64 = vmatprep.subr.bf16.mxu0 0
  %65 = vmatpush1.bf16.msra.mxu0 0
  %66 = vmatprep.subr.bf16.mxu0 0
  %67 = vmatpush1.bf16.msra.mxu0 0
  %68 = vmatprep.subr.bf16.mxu0 0
  %69 = vmatpush1.bf16.msra.mxu0 0
  %70 = vmatprep.subr.bf16.mxu0 0
  %71 = vmatpush1.bf16.msra.mxu0 0
  %72 = vmatprep.subr.bf16.mxu0 0
  %73 = vmatpush1.bf16.msra.mxu0 0
  %74 = vmatprep.subr.bf16.mxu0 0
  %75 = vmatpush1.bf16.msra.mxu0 0
  %76 = vmatprep.subr.bf16.mxu0 0
  %77 = vmatpush1.bf16.msra.mxu0 0
  %78 = vmatprep.subr.bf16.mxu0 0
  %79 = vmatpush1.bf16.msra.mxu0 0
  %80 = vmatprep.subr.bf16.mxu0 0
  %81 = vmatpush1.bf16.msra.mxu0 0
  %82 = vmatprep.mubr.bf16.mxu0 0
  %83 = vmatmul.mubr.bf16.gmra.mrb[0].mxu0 %v44
  %v84 = vpop.f32.mrb[0].mxu0
  %v85 = vadd.f32 %v25, %v84
  %v86 = vpop.f32.mrb[0].mxu0
  %v87 = vpop.f32.mrb[0].mxu0
  %v88 = vpop.f32.mrb[0].mxu0
  %89 = vdwg.mxu0
  %90 = vst [vmem:[%s3] sm:$0xff] %v85
  // Predicated region
  $region14: #{single_feature_conv_forward.12} parent=0 // pred_check
    _
  $region15: #{single_feature_conv_forward.12} parent=0 // pred_check_branch
    %92 = sbr.rel (0) target = $region17
  $region16: #{single_feature_conv_forward.12} parent=0 // pred_region
    _
  $region17: #{single_feature_conv_forward.12} parent=0 // pred_fallthru
    _
  // Predicated region
  $region18: #{single_feature_conv_forward.12} parent=0 // pred_check
    _
  $region19: #{single_feature_conv_forward.12} parent=0 // pred_check_branch
    %94 = sbr.rel (0) target = $region21
  $region20: #{single_feature_conv_forward.12} parent=0 // pred_region
    _
  $region21: #{single_feature_conv_forward.12} parent=0 // pred_fallthru
    _

// kernel: single_feature_conv_forward.13
$region0: #{single_feature_conv_forward.13}
  #allocation0 [shape = 'u32[]', space=smem, size = 0x4, offset = 0x4, fixed_abs, tag = 'smem constant byte address 0x4 - core index']
  #allocation1 [shape = 'u32[144,128]{1,0:T(1,128)}', space=vmem, size = 0x12000, scoped, tag = 'internal scratch']
  %s0 = inlined_call_operand.vmem [shape: f32[16,82,82], index: 0, kind: input, shape index: {}]
  %s1 = inlined_call_operand.vmem [shape: f32[16,1,1], index: 1, kind: output, shape index: {}]
  %s2 = sld [smem:[#allocation0]]
  $region37: #{single_feature_conv_forward.13} parent=0
    _
  %s4 = ssub.s32 1, %s2
  %s5 = scalar_select 0, %s4, %s2
  loop: start=0, step=1, limit=18
  $region2: #{single_feature_conv_forward.13} parent=0 // loop_pre_header
    _
  $region3: #{single_feature_conv_forward.13} parent=0 // loop_header
    %s7 = sphi 0, %s11
    %p8 = scmp.ge.s32.totalorder %s7, 18
    %s17 = sphi 0, %s19
    %s20 = sphi 0, %s17
    %s21 = sphi 0, %s20
    %s37 = sphi 0, %s21
    %s43 = sphi 0, %s45
    %s46 = sphi 0, %s43
    %s47 = sphi 0, %s46
    %s63 = sphi 0, %s47
  $region4: #{single_feature_conv_forward.13} parent=0 // loop_header_branch
    %10 = sbr.rel (%p8) target = $region8
  $region5: #{single_feature_conv_forward.13} parent=0 // loop_body
    %s12 = ssub.s32 %s7, 1
    %s13 = ssub.s32 %s7, 2
    %s14 = sadd.s32 %s7, 1
    %s15 = ssub.s32 %s7, %s14
    %p16 = scmp.eq.s32.totalorder %s15, 0
    %s18 = sadd.s32 %s17, 1
    %s19 = scalar_select %p16, %s17, %s18
    %p22 = pneg %p16
    %p23 = scmp.eq.s32.totalorder %s7, 15
    %p24 = por %p22, %p23
    %p25 = scmp.ne.s32.totalorder %s17, %s20
    %p26 = scmp.eq.s32.totalorder %s7, 0
    %p27 = por %p25, %p26
    %p28 = scmp.ne.s32.totalorder %s17, %s20
    %p29 = scmp.eq.s32.totalorder %s12, 15
    %p30 = por %p28, %p29
    %p31 = scmp.ne.s32.totalorder %s20, %s21
    %p32 = scmp.eq.s32.totalorder %s12, 0
    %p33 = por %p31, %p32
    %p34 = scmp.ne.s32.totalorder %s20, %s21
    %p35 = scmp.eq.s32.totalorder %s13, 15
    %p36 = por %p34, %p35
    %p38 = scmp.ne.s32.totalorder %s21, %s37
    %p39 = scmp.eq.s32.totalorder %s13, 0
    %p40 = por %p38, %p39
    %s41 = ssub.s32 %s7, %s14
    %p42 = scmp.eq.s32.totalorder %s41, 0
    %s44 = sadd.s32 %s43, 1
    %s45 = scalar_select %p42, %s43, %s44
    %p48 = pneg %p42
    %p49 = scmp.eq.s32.totalorder %s7, 15
    %p50 = por %p48, %p49
    %p51 = scmp.ne.s32.totalorder %s43, %s46
    %p52 = scmp.eq.s32.totalorder %s7, 0
    %p53 = por %p51, %p52
    %p54 = scmp.ne.s32.totalorder %s43, %s46
    %p55 = scmp.eq.s32.totalorder %s12, 15
    %p56 = por %p54, %p55
    %p57 = scmp.ne.s32.totalorder %s46, %s47
    %p58 = scmp.eq.s32.totalorder %s12, 0
    %p59 = por %p57, %p58
    %p60 = scmp.ne.s32.totalorder %s46, %s47
    %p61 = scmp.eq.s32.totalorder %s13, 15
    %p62 = por %p60, %p61
    %p64 = scmp.ne.s32.totalorder %s47, %s63
    %p65 = scmp.eq.s32.totalorder %s13, 0
    %p66 = por %p64, %p65
    %p67 = scmp.le.s32.totalorder 1, %s7
    %p68 = scmp.lt.s32.totalorder %s7, 17
    %p69 = pnand %p67, %p68
    %p70 = pneg %p69
    // Predicated region
    $region9: #{single_feature_conv_forward.13} parent=5 // pred_check
      _
    $region10: #{single_feature_conv_forward.13} parent=5 // pred_check_branch
      %72 = sbr.rel (%p69) target = $region12
    $region11: #{single_feature_conv_forward.13} parent=5 // pred_region
      %s73 = ssub.s32 %s7, 1
    $region12: #{single_feature_conv_forward.13} parent=5 // pred_fallthru
      _
    %p74 = scmp.lt.s32.totalorder %s7, 16
    // Predicated region
    $region13: #{single_feature_conv_forward.13} parent=5 // pred_check
      %p75 = pneg %p74
    $region14: #{single_feature_conv_forward.13} parent=5 // pred_check_branch
      %77 = sbr.rel (%p75) target = $region16
    $region15: #{single_feature_conv_forward.13} parent=5 // pred_region
      // Predicated region
      $region17: #{single_feature_conv_forward.13} parent=15 // pred_check
        %p78 = pneg %p27
      $region18: #{single_feature_conv_forward.13} parent=15 // pred_check_branch
        %80 = sbr.rel (%p78) target = $region20
      $region19: #{single_feature_conv_forward.13} parent=15 // pred_region
        %p81 = scmp.lt.s32.totalorder %s7, 15
        %s82 = scalar_select %p81, %s7, 15
        %s83 = smul.addr %s82, 11
        %s84 = smul.addr %s83, 8
        %s85 = scalar_lea.vmem %s0, %s84
      $region20: #{single_feature_conv_forward.13} parent=15 // pred_fallthru
        _
    $region16: #{single_feature_conv_forward.13} parent=5 // pred_fallthru
      _
    %p86 = scmp.le.s32.totalorder 1, %s7
    %p87 = scmp.lt.s32.totalorder %s7, 17
    %p88 = pnand %p86, %p87
    %p89 = pneg %p88
    // Predicated region
    $region21: #{single_feature_conv_forward.13} parent=5 // pred_check
      _
    $region22: #{single_feature_conv_forward.13} parent=5 // pred_check_branch
      %91 = sbr.rel (%p88) target = $region24
    $region23: #{single_feature_conv_forward.13} parent=5 // pred_region
      %s92 = ssub.s32 %s7, 1
      %p93 = scmp.lt.s32.totalorder %s12, 15
      %s94 = scalar_select %p93, %s12, 15
      %s95 = smul.addr %s94, 11
      %s96 = smul.addr %s95, 8
      %s97 = scalar_lea.vmem %s0, %s96
      %p98 = pneg %p33
      %p99 = pneg %p30
      %p100 = pneg %p59
      %p101 = pneg %p56
      %p102 = scmp.lt.s32.totalorder %s12, 15
      %s103 = scalar_select %p102, %s12, 15
      %s104 = scalar_lea.vmem %s1, %s103
      %p105 = scmp.lt.s32.totalorder %s12, 15
      %s106 = scalar_select %p105, %s12, 15
      %s107 = smul.addr %s106, 11
      %s108 = smul.addr %s107, 8
      %s109 = scalar_lea.vmem %s0, %s108
      %p110 = scmp.lt.s32.totalorder %s12, 15
      %s111 = scalar_select %p110, %s12, 15
      %s112 = scalar_lea.vmem %s1, %s111
      %v113 = vld [vmem:[%s109] sm:$0xff]
      %v114 = vld [vmem:[%s109 + $0x8] sm:$0xff]
      %v115 = vld [vmem:[%s109 + $0x10] sm:$0xff]
      %v116 = vld [vmem:[%s109 + $0x18] sm:$0xff]
      %v117 = vld [vmem:[%s109 + $0x20] sm:$0xff]
      %v118 = vld [vmem:[%s109 + $0x28] sm:$0xff]
      %v119 = vld [vmem:[%s109 + $0x30] sm:$0xff]
      %v120 = vld [vmem:[%s109 + $0x38] sm:$0xff]
      %v121 = vld [vmem:[%s109 + $0x40] sm:$0xff]
      %v122 = vld [vmem:[%s109 + $0x48] sm:$0xff]
      %v123 = vld [vmem:[%s109 + $0x50] sm:$0x3]
      %vm124 = vcmask 670720
      %v125 = vsel %vm124, %v113, -inf
      %126 = vmax.xlane.f32.xlu0 %v125
      %v127 = vpop.xlane.xlu0 %126
      %v128 = vsel %vm124, %v114, -inf
      %129 = vmax.xlane.f32.xlu0 %v128
      %v130 = vpop.xlane.xlu0 %129
      %v131 = vsel %vm124, %v115, -inf
      %132 = vmax.xlane.f32.xlu0 %v131
      %v133 = vpop.xlane.xlu0 %132
      %v134 = vsel %vm124, %v116, -inf
      %135 = vmax.xlane.f32.xlu0 %v134
      %v136 = vpop.xlane.xlu0 %135
      %v137 = vsel %vm124, %v117, -inf
      %138 = vmax.xlane.f32.xlu0 %v137
      %v139 = vpop.xlane.xlu0 %138
      %v140 = vsel %vm124, %v118, -inf
      %141 = vmax.xlane.f32.xlu0 %v140
      %v142 = vpop.xlane.xlu0 %141
      %v143 = vsel %vm124, %v119, -inf
      %144 = vmax.xlane.f32.xlu0 %v143
      %v145 = vpop.xlane.xlu0 %144
      %v146 = vsel %vm124, %v120, -inf
      %147 = vmax.xlane.f32.xlu0 %v146
      %v148 = vpop.xlane.xlu0 %147
      %v149 = vsel %vm124, %v121, -inf
      %150 = vmax.xlane.f32.xlu0 %v149
      %v151 = vpop.xlane.xlu0 %150
      %v152 = vsel %vm124, %v122, -inf
      %153 = vmax.xlane.f32.xlu0 %v152
      %v154 = vpop.xlane.xlu0 %153
      %vm155 = vcmask 664576
      %v156 = vsel %vm155, %v123, -inf
      %157 = vmax.xlane.f32.xlu0 %v156
      %v158 = vpop.xlane.xlu0 %157
      %v159 = vmax.f32 %v127, %v139
      %v160 = vmax.f32 %v130, %v142
      %v161 = vmax.f32 %v133, %v145
      %v162 = vmax.f32 %v136, %v148
      %v163 = vmax.f32 %v159, %v151
      %v164 = vmax.f32 %v160, %v154
      %vm165 = vcmask 1041408
      %v166 = vsel %vm165, %v158, -inf
      %v167 = vmax.f32 %v161, %v166
      %v168 = vmax.f32 %v163, %v164
      %v169 = vmax.f32 %v167, %v162
      %v170 = vmax.f32 %v168, %v169
      %v171 = vrot.slane %v170, 4
      %v172 = vmax.f32 %v170, %v171
      %v173 = vrot.slane %v172, 2
      %v174 = vmax.f32 %v172, %v173
      %v175 = vrot.slane %v174, 1
      %v176 = vmax.f32 %v174, %v175
      %vm177 = vcmask 0
      %178 = vst.msk [vmem:[%s112] sm:$0x1] %vm177, %v176
      %p179 = scmp.lt.s32.totalorder %s12, 15
      %s180 = scalar_select %p179, %s12, 15
      %s181 = scalar_lea.vmem %s1, %s180
      // Predicated region
      $region25: #{single_feature_conv_forward.13} parent=23 // pred_check
        %p182 = pneg %p56
      $region26: #{single_feature_conv_forward.13} parent=23 // pred_check_branch
        %184 = sbr.rel (%p182) target = $region28
      $region27: #{single_feature_conv_forward.13} parent=23 // pred_region
        _
      $region28: #{single_feature_conv_forward.13} parent=23 // pred_fallthru
        _
    $region24: #{single_feature_conv_forward.13} parent=5 // pred_fallthru
      _
    %p185 = scmp.le.s32.totalorder 2, %s7
    // Predicated region
    $region29: #{single_feature_conv_forward.13} parent=5 // pred_check
      %p186 = pneg %p185
    $region30: #{single_feature_conv_forward.13} parent=5 // pred_check_branch
      %188 = sbr.rel (%p186) target = $region32
    $region31: #{single_feature_conv_forward.13} parent=5 // pred_region
      %s189 = ssub.s32 %s7, 2
      // Predicated region
      $region33: #{single_feature_conv_forward.13} parent=31 // pred_check
        %p190 = pneg %p62
      $region34: #{single_feature_conv_forward.13} parent=31 // pred_check_branch
        %192 = sbr.rel (%p190) target = $region36
      $region35: #{single_feature_conv_forward.13} parent=31 // pred_region
        %p193 = scmp.lt.s32.totalorder %s13, 15
        %s194 = scalar_select %p193, %s13, 15
        %s195 = scalar_lea.vmem %s1, %s194
      $region36: #{single_feature_conv_forward.13} parent=31 // pred_fallthru
        _
    $region32: #{single_feature_conv_forward.13} parent=5 // pred_fallthru
      _
  $region6: #{single_feature_conv_forward.13} parent=0 // loop_footer
    %s11 = sadd.s32 1, %s7
  $region7: #{single_feature_conv_forward.13} parent=0 // loop_footer_branch
    %6 = sbr.rel target = $region3
  $region8: #{single_feature_conv_forward.13} parent=0 // loop_exit
    _

// kernel: single_feature_conv_forward.14
$region0: #{single_feature_conv_forward.14}
  #allocation0 [shape = 'u32[]', space=smem, size = 0x4, offset = 0x4, fixed_abs, tag = 'smem constant byte address 0x4 - core index']
  #allocation1 [shape = 'u32[144,128]{1,0:T(1,128)}', space=vmem, size = 0x12000, scoped, tag = 'internal scratch']
  %s0 = inlined_call_operand.vmem [shape: f32[16,82,82], index: 0, kind: input, shape index: {}]
  %s1 = inlined_call_operand.vmem [shape: f32[16,2,2], index: 1, kind: output, shape index: {}]
  %s2 = sld [smem:[#allocation0]]
  $region37: #{single_feature_conv_forward.14} parent=0
    _
  %s4 = ssub.s32 1, %s2
  %s5 = scalar_select 0, %s4, %s2
  loop: start=0, step=1, limit=18
  $region2: #{single_feature_conv_forward.14} parent=0 // loop_pre_header
    _
  $region3: #{single_feature_conv_forward.14} parent=0 // loop_header
    %s7 = sphi 0, %s11
    %p8 = scmp.ge.s32.totalorder %s7, 18
    %s17 = sphi 0, %s19
    %s20 = sphi 0, %s17
    %s21 = sphi 0, %s20
    %s37 = sphi 0, %s21
    %s43 = sphi 0, %s45
    %s46 = sphi 0, %s43
    %s47 = sphi 0, %s46
    %s63 = sphi 0, %s47
  $region4: #{single_feature_conv_forward.14} parent=0 // loop_header_branch
    %10 = sbr.rel (%p8) target = $region8
  $region5: #{single_feature_conv_forward.14} parent=0 // loop_body
    %s12 = ssub.s32 %s7, 1
    %s13 = ssub.s32 %s7, 2
    %s14 = sadd.s32 %s7, 1
    %s15 = ssub.s32 %s7, %s14
    %p16 = scmp.eq.s32.totalorder %s15, 0
    %s18 = sadd.s32 %s17, 1
    %s19 = scalar_select %p16, %s17, %s18
    %p22 = pneg %p16
    %p23 = scmp.eq.s32.totalorder %s7, 15
    %p24 = por %p22, %p23
    %p25 = scmp.ne.s32.totalorder %s17, %s20
    %p26 = scmp.eq.s32.totalorder %s7, 0
    %p27 = por %p25, %p26
    %p28 = scmp.ne.s32.totalorder %s17, %s20
    %p29 = scmp.eq.s32.totalorder %s12, 15
    %p30 = por %p28, %p29
    %p31 = scmp.ne.s32.totalorder %s20, %s21
    %p32 = scmp.eq.s32.totalorder %s12, 0
    %p33 = por %p31, %p32
    %p34 = scmp.ne.s32.totalorder %s20, %s21
    %p35 = scmp.eq.s32.totalorder %s13, 15
    %p36 = por %p34, %p35
    %p38 = scmp.ne.s32.totalorder %s21, %s37
    %p39 = scmp.eq.s32.totalorder %s13, 0
    %p40 = por %p38, %p39
    %s41 = ssub.s32 %s7, %s14
    %p42 = scmp.eq.s32.totalorder %s41, 0
    %s44 = sadd.s32 %s43, 1
    %s45 = scalar_select %p42, %s43, %s44
    %p48 = pneg %p42
    %p49 = scmp.eq.s32.totalorder %s7, 15
    %p50 = por %p48, %p49
    %p51 = scmp.ne.s32.totalorder %s43, %s46
    %p52 = scmp.eq.s32.totalorder %s7, 0
    %p53 = por %p51, %p52
    %p54 = scmp.ne.s32.totalorder %s43, %s46
    %p55 = scmp.eq.s32.totalorder %s12, 15
    %p56 = por %p54, %p55
    %p57 = scmp.ne.s32.totalorder %s46, %s47
    %p58 = scmp.eq.s32.totalorder %s12, 0
    %p59 = por %p57, %p58
    %p60 = scmp.ne.s32.totalorder %s46, %s47
    %p61 = scmp.eq.s32.totalorder %s13, 15
    %p62 = por %p60, %p61
    %p64 = scmp.ne.s32.totalorder %s47, %s63
    %p65 = scmp.eq.s32.totalorder %s13, 0
    %p66 = por %p64, %p65
    %p67 = scmp.le.s32.totalorder 1, %s7
    %p68 = scmp.lt.s32.totalorder %s7, 17
    %p69 = pnand %p67, %p68
    %p70 = pneg %p69
    // Predicated region
    $region9: #{single_feature_conv_forward.14} parent=5 // pred_check
      _
    $region10: #{single_feature_conv_forward.14} parent=5 // pred_check_branch
      %72 = sbr.rel (%p69) target = $region12
    $region11: #{single_feature_conv_forward.14} parent=5 // pred_region
      %s73 = ssub.s32 %s7, 1
    $region12: #{single_feature_conv_forward.14} parent=5 // pred_fallthru
      _
    %p74 = scmp.lt.s32.totalorder %s7, 16
    // Predicated region
    $region13: #{single_feature_conv_forward.14} parent=5 // pred_check
      %p75 = pneg %p74
    $region14: #{single_feature_conv_forward.14} parent=5 // pred_check_branch
      %77 = sbr.rel (%p75) target = $region16
    $region15: #{single_feature_conv_forward.14} parent=5 // pred_region
      // Predicated region
      $region17: #{single_feature_conv_forward.14} parent=15 // pred_check
        %p78 = pneg %p27
      $region18: #{single_feature_conv_forward.14} parent=15 // pred_check_branch
        %80 = sbr.rel (%p78) target = $region20
      $region19: #{single_feature_conv_forward.14} parent=15 // pred_region
        %p81 = scmp.lt.s32.totalorder %s7, 15
        %s82 = scalar_select %p81, %s7, 15
        %s83 = smul.addr %s82, 11
        %s84 = smul.addr %s83, 8
        %s85 = scalar_lea.vmem %s0, %s84
      $region20: #{single_feature_conv_forward.14} parent=15 // pred_fallthru
        _
    $region16: #{single_feature_conv_forward.14} parent=5 // pred_fallthru
      _
    %p86 = scmp.le.s32.totalorder 1, %s7
    %p87 = scmp.lt.s32.totalorder %s7, 17
    %p88 = pnand %p86, %p87
    %p89 = pneg %p88
    // Predicated region
    $region21: #{single_feature_conv_forward.14} parent=5 // pred_check
      _
    $region22: #{single_feature_conv_forward.14} parent=5 // pred_check_branch
      %91 = sbr.rel (%p88) target = $region24
    $region23: #{single_feature_conv_forward.14} parent=5 // pred_region
      %s92 = ssub.s32 %s7, 1
      %p93 = scmp.lt.s32.totalorder %s12, 15
      %s94 = scalar_select %p93, %s12, 15
      %s95 = smul.addr %s94, 11
      %s96 = smul.addr %s95, 8
      %s97 = scalar_lea.vmem %s0, %s96
      %p98 = pneg %p33
      %p99 = pneg %p30
      %p100 = pneg %p59
      %p101 = pneg %p56
      %p102 = scmp.lt.s32.totalorder %s12, 15
      %s103 = scalar_select %p102, %s12, 15
      %s104 = smul.addr %s103, 2
      %s105 = scalar_lea.vmem %s1, %s104
      %p106 = scmp.lt.s32.totalorder %s12, 15
      %s107 = scalar_select %p106, %s12, 15
      %s108 = smul.addr %s107, 11
      %s109 = smul.addr %s108, 8
      %s110 = scalar_lea.vmem %s0, %s109
      %p111 = scmp.lt.s32.totalorder %s12, 15
      %s112 = scalar_select %p111, %s12, 15
      %s113 = smul.addr %s112, 2
      %s114 = scalar_lea.vmem %s1, %s113
      %v115 = vld [vmem:[%s110] sm:$0xff]
      %v116 = vld [vmem:[%s110 + $0x8] sm:$0xff]
      %v117 = vld [vmem:[%s110 + $0x10] sm:$0xff]
      %v118 = vld [vmem:[%s110 + $0x18] sm:$0xff]
      %v119 = vld [vmem:[%s110 + $0x20] sm:$0xff]
      %v120 = vld [vmem:[%s110 + $0x28] sm:$0x1]
      %vm121 = vcmask 334848
      %v122 = vsel %vm121, %v115, -inf
      %123 = vmax.xlane.f32.xlu0 %v122
      %v124 = vpop.xlane.xlu0 %123
      %v125 = vsel %vm121, %v116, -inf
      %126 = vmax.xlane.f32.xlu0 %v125
      %v127 = vpop.xlane.xlu0 %126
      %v128 = vsel %vm121, %v117, -inf
      %129 = vmax.xlane.f32.xlu0 %v128
      %v130 = vpop.xlane.xlu0 %129
      %v131 = vsel %vm121, %v118, -inf
      %132 = vmax.xlane.f32.xlu0 %v131
      %v133 = vpop.xlane.xlu0 %132
      %v134 = vsel %vm121, %v119, -inf
      %135 = vmax.xlane.f32.xlu0 %v134
      %v136 = vpop.xlane.xlu0 %135
      %vm137 = vcmask 327680
      %v138 = vsel %vm137, %v120, -inf
      %139 = vmax.xlane.f32.xlu0 %v138
      %v140 = vpop.xlane.xlu0 %139
      %v141 = vmax.f32 %v124, %v136
      %vm142 = vcmask 1040384
      %v143 = vsel %vm142, %v140, -inf
      %v144 = vmax.f32 %v127, %v143
      %v145 = vmax.f32 %v141, %v144
      %v146 = vmax.f32 %v130, %v133
      %v147 = vmax.f32 %v145, %v146
      %v148 = vrot.slane %v147, 4
      %v149 = vmax.f32 %v147, %v148
      %v150 = vrot.slane %v149, 2
      %v151 = vmax.f32 %v149, %v150
      %v152 = vrot.slane %v151, 1
      %v153 = vmax.f32 %v151, %v152
      %vm154 = vcmask 671048
      %v155 = vsel %vm154, %v115, -inf
      %156 = vmax.xlane.f32.xlu0 %v155
      %v157 = vpop.xlane.xlu0 %156
      %v158 = vsel %vm154, %v116, -inf
      %159 = vmax.xlane.f32.xlu0 %v158
      %v160 = vpop.xlane.xlu0 %159
      %v161 = vsel %vm154, %v117, -inf
      %162 = vmax.xlane.f32.xlu0 %v161
      %v163 = vpop.xlane.xlu0 %162
      %v164 = vsel %vm154, %v118, -inf
      %165 = vmax.xlane.f32.xlu0 %v164
      %v166 = vpop.xlane.xlu0 %165
      %v167 = vsel %vm154, %v119, -inf
      %168 = vmax.xlane.f32.xlu0 %v167
      %v169 = vpop.xlane.xlu0 %168
      %vm170 = vcmask 663880
      %v171 = vsel %vm170, %v120, -inf
      %172 = vmax.xlane.f32.xlu0 %v171
      %v173 = vpop.xlane.xlu0 %172
      %v174 = vmax.f32 %v157, %v169
      %v175 = vsel %vm142, %v173, -inf
      %v176 = vmax.f32 %v160, %v175
      %v177 = vmax.f32 %v174, %v176
      %v178 = vmax.f32 %v163, %v166
      %v179 = vmax.f32 %v177, %v178
      %v180 = vrot.slane %v179, 4
      %v181 = vmax.f32 %v179, %v180
      %v182 = vrot.slane %v181, 2
      %v183 = vmax.f32 %v181, %v182
      %v184 = vrot.slane %v183, 1
      %v185 = vmax.f32 %v183, %v184
      %vm186 = vcmask 7168
      %v187 = vsel %vm186, %v153, %v185
      %v188 = vld [vmem:[%s110 + $0x29] sm:$0xff]
      %v189 = vld [vmem:[%s110 + $0x31] sm:$0xff]
      %v190 = vld [vmem:[%s110 + $0x39] sm:$0xff]
      %v191 = vld [vmem:[%s110 + $0x41] sm:$0xff]
      %v192 = vld [vmem:[%s110 + $0x49] sm:$0xff]
      %v193 = vld [vmem:[%s110 + $0x51] sm:$0x1]
      %v194 = vsel %vm121, %v188, -inf
      %195 = vmax.xlane.f32.xlu0 %v194
      %v196 = vpop.xlane.xlu0 %195
      %v197 = vsel %vm121, %v189, -inf
      %198 = vmax.xlane.f32.xlu0 %v197
      %v199 = vpop.xlane.xlu0 %198
      %v200 = vsel %vm121, %v190, -inf
      %201 = vmax.xlane.f32.xlu0 %v200
      %v202 = vpop.xlane.xlu0 %201
      %v203 = vsel %vm121, %v191, -inf
      %204 = vmax.xlane.f32.xlu0 %v203
      %v205 = vpop.xlane.xlu0 %204
      %v206 = vsel %vm121, %v192, -inf
      %207 = vmax.xlane.f32.xlu0 %v206
      %v208 = vpop.xlane.xlu0 %207
      %v209 = vsel %vm137, %v193, -inf
      %210 = vmax.xlane.f32.xlu0 %v209
      %v211 = vpop.xlane.xlu0 %210
      %v212 = vmax.f32 %v196, %v208
      %v213 = vsel %vm142, %v211, -inf
      %v214 = vmax.f32 %v199, %v213
      %v215 = vmax.f32 %v212, %v214
      %v216 = vmax.f32 %v202, %v205
      %v217 = vmax.f32 %v215, %v216
      %v218 = vrot.slane %v217, 4
      %v219 = vmax.f32 %v217, %v218
      %v220 = vrot.slane %v219, 2
      %v221 = vmax.f32 %v219, %v220
      %v222 = vrot.slane %v221, 1
      %v223 = vmax.f32 %v221, %v222
      %v224 = vsel %vm154, %v188, -inf
      %225 = vmax.xlane.f32.xlu0 %v224
      %v226 = vpop.xlane.xlu0 %225
      %v227 = vsel %vm154, %v189, -inf
      %228 = vmax.xlane.f32.xlu0 %v227
      %v229 = vpop.xlane.xlu0 %228
      %v230 = vsel %vm154, %v190, -inf
      %231 = vmax.xlane.f32.xlu0 %v230
      %v232 = vpop.xlane.xlu0 %231
      %v233 = vsel %vm154, %v191, -inf
      %234 = vmax.xlane.f32.xlu0 %v233
      %v235 = vpop.xlane.xlu0 %234
      %v236 = vsel %vm154, %v192, -inf
      %237 = vmax.xlane.f32.xlu0 %v236
      %v238 = vpop.xlane.xlu0 %237
      %v239 = vsel %vm170, %v193, -inf
      %240 = vmax.xlane.f32.xlu0 %v239
      %v241 = vpop.xlane.xlu0 %240
      %v242 = vmax.f32 %v226, %v238
      %v243 = vsel %vm142, %v241, -inf
      %v244 = vmax.f32 %v229, %v243
      %v245 = vmax.f32 %v242, %v244
      %v246 = vmax.f32 %v232, %v235
      %v247 = vmax.f32 %v245, %v246
      %v248 = vrot.slane %v247, 4
      %v249 = vmax.f32 %v247, %v248
      %v250 = vrot.slane %v249, 2
      %v251 = vmax.f32 %v249, %v250
      %v252 = vrot.slane %v251, 1
      %v253 = vmax.f32 %v251, %v252
      %v254 = vsel %vm186, %v223, %v253
      %v256 = vrot.slane %v254, 7
      %v258 = vsel %vm142, %v187, %v256
      %vm259 = vcmask 9216
      %260 = vst.msk [vmem:[%s114] sm:$0x3] %vm259, %v258
      %p261 = scmp.lt.s32.totalorder %s12, 15
      %s262 = scalar_select %p261, %s12, 15
      %s263 = smul.addr %s262, 2
      %s264 = scalar_lea.vmem %s1, %s263
      // Predicated region
      $region25: #{single_feature_conv_forward.14} parent=23 // pred_check
        %p265 = pneg %p56
      $region26: #{single_feature_conv_forward.14} parent=23 // pred_check_branch
        %267 = sbr.rel (%p265) target = $region28
      $region27: #{single_feature_conv_forward.14} parent=23 // pred_region
        _
      $region28: #{single_feature_conv_forward.14} parent=23 // pred_fallthru
        _
    $region24: #{single_feature_conv_forward.14} parent=5 // pred_fallthru
      _
    %p268 = scmp.le.s32.totalorder 2, %s7
    // Predicated region
    $region29: #{single_feature_conv_forward.14} parent=5 // pred_check
      %p269 = pneg %p268
    $region30: #{single_feature_conv_forward.14} parent=5 // pred_check_branch
      %271 = sbr.rel (%p269) target = $region32
    $region31: #{single_feature_conv_forward.14} parent=5 // pred_region
      %s272 = ssub.s32 %s7, 2
      // Predicated region
      $region33: #{single_feature_conv_forward.14} parent=31 // pred_check
        %p273 = pneg %p62
      $region34: #{single_feature_conv_forward.14} parent=31 // pred_check_branch
        %275 = sbr.rel (%p273) target = $region36
      $region35: #{single_feature_conv_forward.14} parent=31 // pred_region
        %p276 = scmp.lt.s32.totalorder %s13, 15
        %s277 = scalar_select %p276, %s13, 15
        %s278 = smul.addr %s277, 2
        %s279 = scalar_lea.vmem %s1, %s278
      $region36: #{single_feature_conv_forward.14} parent=31 // pred_fallthru
        _
    $region32: #{single_feature_conv_forward.14} parent=5 // pred_fallthru
      _
  $region6: #{single_feature_conv_forward.14} parent=0 // loop_footer
    %s11 = sadd.s32 1, %s7
  $region7: #{single_feature_conv_forward.14} parent=0 // loop_footer_branch
    %6 = sbr.rel target = $region3
  $region8: #{single_feature_conv_forward.14} parent=0 // loop_exit
    _

// kernel: single_feature_conv_forward.15
$region0: #{single_feature_conv_forward.15}
  #allocation0 [shape = 'u32[]', space=smem, size = 0x4, offset = 0x4, fixed_abs, tag = 'smem constant byte address 0x4 - core index']
  #allocation1 [shape = 'u32[144,128]{1,0:T(1,128)}', space=vmem, size = 0x12000, scoped, tag = 'internal scratch']
  %s0 = inlined_call_operand.vmem [shape: f32[16,82,82], index: 0, kind: input, shape index: {}]
  %s1 = inlined_call_operand.vmem [shape: f32[16,4,4], index: 1, kind: output, shape index: {}]
  %s2 = sld [smem:[#allocation0]]
  $region37: #{single_feature_conv_forward.15} parent=0
    _
  %s4 = ssub.s32 1, %s2
  %s5 = scalar_select 0, %s4, %s2
  loop: start=0, step=1, limit=18
  $region2: #{single_feature_conv_forward.15} parent=0 // loop_pre_header
    _
  $region3: #{single_feature_conv_forward.15} parent=0 // loop_header
    %s7 = sphi 0, %s11
    %p8 = scmp.ge.s32.totalorder %s7, 18
    %s17 = sphi 0, %s19
    %s20 = sphi 0, %s17
    %s21 = sphi 0, %s20
    %s37 = sphi 0, %s21
    %s43 = sphi 0, %s45
    %s46 = sphi 0, %s43
    %s47 = sphi 0, %s46
    %s63 = sphi 0, %s47
  $region4: #{single_feature_conv_forward.15} parent=0 // loop_header_branch
    %10 = sbr.rel (%p8) target = $region8
  $region5: #{single_feature_conv_forward.15} parent=0 // loop_body
    %s12 = ssub.s32 %s7, 1
    %s13 = ssub.s32 %s7, 2
    %s14 = sadd.s32 %s7, 1
    %s15 = ssub.s32 %s7, %s14
    %p16 = scmp.eq.s32.totalorder %s15, 0
    %s18 = sadd.s32 %s17, 1
    %s19 = scalar_select %p16, %s17, %s18
    %p22 = pneg %p16
    %p23 = scmp.eq.s32.totalorder %s7, 15
    %p24 = por %p22, %p23
    %p25 = scmp.ne.s32.totalorder %s17, %s20
    %p26 = scmp.eq.s32.totalorder %s7, 0
    %p27 = por %p25, %p26
    %p28 = scmp.ne.s32.totalorder %s17, %s20
    %p29 = scmp.eq.s32.totalorder %s12, 15
    %p30 = por %p28, %p29
    %p31 = scmp.ne.s32.totalorder %s20, %s21
    %p32 = scmp.eq.s32.totalorder %s12, 0
    %p33 = por %p31, %p32
    %p34 = scmp.ne.s32.totalorder %s20, %s21
    %p35 = scmp.eq.s32.totalorder %s13, 15
    %p36 = por %p34, %p35
    %p38 = scmp.ne.s32.totalorder %s21, %s37
    %p39 = scmp.eq.s32.totalorder %s13, 0
    %p40 = por %p38, %p39
    %s41 = ssub.s32 %s7, %s14
    %p42 = scmp.eq.s32.totalorder %s41, 0
    %s44 = sadd.s32 %s43, 1
    %s45 = scalar_select %p42, %s43, %s44
    %p48 = pneg %p42
    %p49 = scmp.eq.s32.totalorder %s7, 15
    %p50 = por %p48, %p49
    %p51 = scmp.ne.s32.totalorder %s43, %s46
    %p52 = scmp.eq.s32.totalorder %s7, 0
    %p53 = por %p51, %p52
    %p54 = scmp.ne.s32.totalorder %s43, %s46
    %p55 = scmp.eq.s32.totalorder %s12, 15
    %p56 = por %p54, %p55
    %p57 = scmp.ne.s32.totalorder %s46, %s47
    %p58 = scmp.eq.s32.totalorder %s12, 0
    %p59 = por %p57, %p58
    %p60 = scmp.ne.s32.totalorder %s46, %s47
    %p61 = scmp.eq.s32.totalorder %s13, 15
    %p62 = por %p60, %p61
    %p64 = scmp.ne.s32.totalorder %s47, %s63
    %p65 = scmp.eq.s32.totalorder %s13, 0
    %p66 = por %p64, %p65
    %p67 = scmp.le.s32.totalorder 1, %s7
    %p68 = scmp.lt.s32.totalorder %s7, 17
    %p69 = pnand %p67, %p68
    %p70 = pneg %p69
    // Predicated region
    $region9: #{single_feature_conv_forward.15} parent=5 // pred_check
      _
    $region10: #{single_feature_conv_forward.15} parent=5 // pred_check_branch
      %72 = sbr.rel (%p69) target = $region12
    $region11: #{single_feature_conv_forward.15} parent=5 // pred_region
      %s73 = ssub.s32 %s7, 1
    $region12: #{single_feature_conv_forward.15} parent=5 // pred_fallthru
      _
    %p74 = scmp.lt.s32.totalorder %s7, 16
    // Predicated region
    $region13: #{single_feature_conv_forward.15} parent=5 // pred_check
      %p75 = pneg %p74
    $region14: #{single_feature_conv_forward.15} parent=5 // pred_check_branch
      %77 = sbr.rel (%p75) target = $region16
    $region15: #{single_feature_conv_forward.15} parent=5 // pred_region
      // Predicated region
      $region17: #{single_feature_conv_forward.15} parent=15 // pred_check
        %p78 = pneg %p27
      $region18: #{single_feature_conv_forward.15} parent=15 // pred_check_branch
        %80 = sbr.rel (%p78) target = $region20
      $region19: #{single_feature_conv_forward.15} parent=15 // pred_region
        %p81 = scmp.lt.s32.totalorder %s7, 15
        %s82 = scalar_select %p81, %s7, 15
        %s83 = smul.addr %s82, 11
        %s84 = smul.addr %s83, 8
        %s85 = scalar_lea.vmem %s0, %s84
      $region20: #{single_feature_conv_forward.15} parent=15 // pred_fallthru
        _
    $region16: #{single_feature_conv_forward.15} parent=5 // pred_fallthru
      _
    %p86 = scmp.le.s32.totalorder 1, %s7
    %p87 = scmp.lt.s32.totalorder %s7, 17
    %p88 = pnand %p86, %p87
    %p89 = pneg %p88
    // Predicated region
    $region21: #{single_feature_conv_forward.15} parent=5 // pred_check
      _
    $region22: #{single_feature_conv_forward.15} parent=5 // pred_check_branch
      %91 = sbr.rel (%p88) target = $region24
    $region23: #{single_feature_conv_forward.15} parent=5 // pred_region
      %s92 = ssub.s32 %s7, 1
      %p93 = scmp.lt.s32.totalorder %s12, 15
      %s94 = scalar_select %p93, %s12, 15
      %s95 = smul.addr %s94, 11
      %s96 = smul.addr %s95, 8
      %s97 = scalar_lea.vmem %s0, %s96
      %p98 = pneg %p33
      %p99 = pneg %p30
      %p100 = pneg %p59
      %p101 = pneg %p56
      %p102 = scmp.lt.s32.totalorder %s12, 15
      %s103 = scalar_select %p102, %s12, 15
      %s104 = smul.addr %s103, 4
      %s105 = scalar_lea.vmem %s1, %s104
      %p106 = scmp.lt.s32.totalorder %s12, 15
      %s107 = scalar_select %p106, %s12, 15
      %s108 = smul.addr %s107, 11
      %s109 = smul.addr %s108, 8
      %s110 = scalar_lea.vmem %s0, %s109
      %p111 = scmp.lt.s32.totalorder %s12, 15
      %s112 = scalar_select %p111, %s12, 15
      %s113 = smul.addr %s112, 4
      %s114 = scalar_lea.vmem %s1, %s113
      %v115 = vld [vmem:[%s110] sm:$0xff]
      %v116 = vld [vmem:[%s110 + $0x8] sm:$0xff]
      %v117 = vld [vmem:[%s110 + $0x10] sm:$0x1f]
      %vm118 = vcmask 171008
      %v119 = vsel %vm118, %v115, -inf
      %120 = vmax.xlane.f32.xlu0 %v119
      %v121 = vpop.xlane.xlu0 %120
      %v122 = vsel %vm118, %v116, -inf
      %123 = vmax.xlane.f32.xlu0 %v122
      %v124 = vpop.xlane.xlu0 %123
      %vm125 = vcmask 167936
      %v126 = vsel %vm125, %v117, -inf
      %127 = vmax.xlane.f32.xlu0 %v126
      %v128 = vpop.xlane.xlu0 %127
      %vm129 = vcmask 1044480
      %v130 = vsel %vm129, %v128, -inf
      %v131 = vmax.f32 %v121, %v124
      %v132 = vmax.f32 %v131, %v130
      %v133 = vrot.slane %v132, 4
      %v134 = vmax.f32 %v132, %v133
      %v135 = vrot.slane %v134, 2
      %v136 = vmax.f32 %v134, %v135
      %v137 = vrot.slane %v136, 1
      %v138 = vmax.f32 %v136, %v137
      %vm139 = vcmask 335008
      %v140 = vsel %vm139, %v115, -inf
      %141 = vmax.xlane.f32.xlu0 %v140
      %v142 = vpop.xlane.xlu0 %141
      %v143 = vsel %vm139, %v116, -inf
      %144 = vmax.xlane.f32.xlu0 %v143
      %v145 = vpop.xlane.xlu0 %144
      %vm146 = vcmask 331936
      %v147 = vsel %vm146, %v117, -inf
      %148 = vmax.xlane.f32.xlu0 %v147
      %v149 = vpop.xlane.xlu0 %148
      %v150 = vsel %vm129, %v149, -inf
      %v151 = vmax.f32 %v142, %v145
      %v152 = vmax.f32 %v151, %v150
      %v153 = vrot.slane %v152, 4
      %v154 = vmax.f32 %v152, %v153
      %v155 = vrot.slane %v154, 2
      %v156 = vmax.f32 %v154, %v155
      %v157 = vrot.slane %v156, 1
      %v158 = vmax.f32 %v156, %v157
      %vm159 = vcmask 499008
      %v160 = vsel %vm159, %v115, -inf
      %161 = vmax.xlane.f32.xlu0 %v160
      %v162 = vpop.xlane.xlu0 %161
      %v163 = vsel %vm159, %v116, -inf
      %164 = vmax.xlane.f32.xlu0 %v163
      %v165 = vpop.xlane.xlu0 %164
      %vm166 = vcmask 495936
      %v167 = vsel %vm166, %v117, -inf
      %168 = vmax.xlane.f32.xlu0 %v167
      %v169 = vpop.xlane.xlu0 %168
      %v170 = vsel %vm129, %v169, -inf
      %v171 = vmax.f32 %v162, %v165
      %v172 = vmax.f32 %v171, %v170
      %v173 = vrot.slane %v172, 4
      %v174 = vmax.f32 %v172, %v173
      %v175 = vrot.slane %v174, 2
      %v176 = vmax.f32 %v174, %v175
      %v177 = vrot.slane %v176, 1
      %v178 = vmax.f32 %v176, %v177
      %vm179 = vcmask 663008
      %v180 = vsel %vm179, %v115, -inf
      %181 = vmax.xlane.f32.xlu0 %v180
      %v182 = vpop.xlane.xlu0 %181
      %v183 = vsel %vm179, %v116, -inf
      %184 = vmax.xlane.f32.xlu0 %v183
      %v185 = vpop.xlane.xlu0 %184
      %vm186 = vcmask 659936
      %v187 = vsel %vm186, %v117, -inf
      %188 = vmax.xlane.f32.xlu0 %v187
      %v189 = vpop.xlane.xlu0 %188
      %v190 = vsel %vm129, %v189, -inf
      %v191 = vmax.f32 %v182, %v185
      %v192 = vmax.f32 %v191, %v190
      %v193 = vrot.slane %v192, 4
      %v194 = vmax.f32 %v192, %v193
      %v195 = vrot.slane %v194, 2
      %v196 = vmax.f32 %v194, %v195
      %v197 = vrot.slane %v196, 1
      %v198 = vmax.f32 %v196, %v197
      %vm199 = vcmask 7168
      %v200 = vsel %vm199, %v138, %v158
      %vm201 = vcmask 15360
      %v202 = vsel %vm201, %v200, %v178
      %vm203 = vcmask 23552
      %v204 = vsel %vm203, %v202, %v198
      %v205 = vld [vmem:[%s110 + $0x14] sm:$0xff]
      %v206 = vld [vmem:[%s110 + $0x1c] sm:$0xff]
      %v207 = vld [vmem:[%s110 + $0x24] sm:$0x1f]
      %v208 = vsel %vm118, %v205, -inf
      %209 = vmax.xlane.f32.xlu0 %v208
      %v210 = vpop.xlane.xlu0 %209
      %v211 = vsel %vm118, %v206, -inf
      %212 = vmax.xlane.f32.xlu0 %v211
      %v213 = vpop.xlane.xlu0 %212
      %v214 = vsel %vm125, %v207, -inf
      %215 = vmax.xlane.f32.xlu0 %v214
      %v216 = vpop.xlane.xlu0 %215
      %v217 = vsel %vm129, %v216, -inf
      %v218 = vmax.f32 %v210, %v213
      %v219 = vmax.f32 %v218, %v217
      %v220 = vrot.slane %v219, 4
      %v221 = vmax.f32 %v219, %v220
      %v222 = vrot.slane %v221, 2
      %v223 = vmax.f32 %v221, %v222
      %v224 = vrot.slane %v223, 1
      %v225 = vmax.f32 %v223, %v224
      %v226 = vsel %vm139, %v205, -inf
      %227 = vmax.xlane.f32.xlu0 %v226
      %v228 = vpop.xlane.xlu0 %227
      %v229 = vsel %vm139, %v206, -inf
      %230 = vmax.xlane.f32.xlu0 %v229
      %v231 = vpop.xlane.xlu0 %230
      %v232 = vsel %vm146, %v207, -inf
      %233 = vmax.xlane.f32.xlu0 %v232
      %v234 = vpop.xlane.xlu0 %233
      %v235 = vsel %vm129, %v234, -inf
      %v236 = vmax.f32 %v228, %v231
      %v237 = vmax.f32 %v236, %v235
      %v238 = vrot.slane %v237, 4
      %v239 = vmax.f32 %v237, %v238
      %v240 = vrot.slane %v239, 2
      %v241 = vmax.f32 %v239, %v240
      %v242 = vrot.slane %v241, 1
      %v243 = vmax.f32 %v241, %v242
      %v244 = vsel %vm159, %v205, -inf
      %245 = vmax.xlane.f32.xlu0 %v244
      %v246 = vpop.xlane.xlu0 %245
      %v247 = vsel %vm159, %v206, -inf
      %248 = vmax.xlane.f32.xlu0 %v247
      %v249 = vpop.xlane.xlu0 %248
      %v250 = vsel %vm166, %v207, -inf
      %251 = vmax.xlane.f32.xlu0 %v250
      %v252 = vpop.xlane.xlu0 %251
      %v253 = vsel %vm129, %v252, -inf
      %v254 = vmax.f32 %v246, %v249
      %v255 = vmax.f32 %v254, %v253
      %v256 = vrot.slane %v255, 4
      %v257 = vmax.f32 %v255, %v256
      %v258 = vrot.slane %v257, 2
      %v259 = vmax.f32 %v257, %v258
      %v260 = vrot.slane %v259, 1
      %v261 = vmax.f32 %v259, %v260
      %v262 = vsel %vm179, %v205, -inf
      %263 = vmax.xlane.f32.xlu0 %v262
      %v264 = vpop.xlane.xlu0 %263
      %v265 = vsel %vm179, %v206, -inf
      %266 = vmax.xlane.f32.xlu0 %v265
      %v267 = vpop.xlane.xlu0 %266
      %v268 = vsel %vm186, %v207, -inf
      %269 = vmax.xlane.f32.xlu0 %v268
      %v270 = vpop.xlane.xlu0 %269
      %v271 = vsel %vm129, %v270, -inf
      %v272 = vmax.f32 %v264, %v267
      %v273 = vmax.f32 %v272, %v271
      %v274 = vrot.slane %v273, 4
      %v275 = vmax.f32 %v273, %v274
      %v276 = vrot.slane %v275, 2
      %v277 = vmax.f32 %v275, %v276
      %v278 = vrot.slane %v277, 1
      %v279 = vmax.f32 %v277, %v278
      %v280 = vsel %vm199, %v225, %v243
      %v281 = vsel %vm201, %v280, %v261
      %v282 = vsel %vm203, %v281, %v279
      %v283 = vld [vmem:[%s110 + $0x28] sm:$0xff]
      %v284 = vld [vmem:[%s110 + $0x30] sm:$0xff]
      %v285 = vld [vmem:[%s110 + $0x38] sm:$0x1f]
      %v286 = vsel %vm118, %v283, -inf
      %287 = vmax.xlane.f32.xlu0 %v286
      %v288 = vpop.xlane.xlu0 %287
      %v289 = vsel %vm118, %v284, -inf
      %290 = vmax.xlane.f32.xlu0 %v289
      %v291 = vpop.xlane.xlu0 %290
      %v292 = vsel %vm125, %v285, -inf
      %293 = vmax.xlane.f32.xlu0 %v292
      %v294 = vpop.xlane.xlu0 %293
      %v295 = vsel %vm129, %v294, -inf
      %v296 = vmax.f32 %v288, %v291
      %v297 = vmax.f32 %v296, %v295
      %v298 = vrot.slane %v297, 4
      %v299 = vmax.f32 %v297, %v298
      %v300 = vrot.slane %v299, 2
      %v301 = vmax.f32 %v299, %v300
      %v302 = vrot.slane %v301, 1
      %v303 = vmax.f32 %v301, %v302
      %v304 = vsel %vm139, %v283, -inf
      %305 = vmax.xlane.f32.xlu0 %v304
      %v306 = vpop.xlane.xlu0 %305
      %v307 = vsel %vm139, %v284, -inf
      %308 = vmax.xlane.f32.xlu0 %v307
      %v309 = vpop.xlane.xlu0 %308
      %v310 = vsel %vm146, %v285, -inf
      %311 = vmax.xlane.f32.xlu0 %v310
      %v312 = vpop.xlane.xlu0 %311
      %v313 = vsel %vm129, %v312, -inf
      %v314 = vmax.f32 %v306, %v309
      %v315 = vmax.f32 %v314, %v313
      %v316 = vrot.slane %v315, 4
      %v317 = vmax.f32 %v315, %v316
      %v318 = vrot.slane %v317, 2
      %v319 = vmax.f32 %v317, %v318
      %v320 = vrot.slane %v319, 1
      %v321 = vmax.f32 %v319, %v320
      %v322 = vsel %vm159, %v283, -inf
      %323 = vmax.xlane.f32.xlu0 %v322
      %v324 = vpop.xlane.xlu0 %323
      %v325 = vsel %vm159, %v284, -inf
      %326 = vmax.xlane.f32.xlu0 %v325
      %v327 = vpop.xlane.xlu0 %326
      %v328 = vsel %vm166, %v285, -inf
      %329 = vmax.xlane.f32.xlu0 %v328
      %v330 = vpop.xlane.xlu0 %329
      %v331 = vsel %vm129, %v330, -inf
      %v332 = vmax.f32 %v324, %v327
      %v333 = vmax.f32 %v332, %v331
      %v334 = vrot.slane %v333, 4
      %v335 = vmax.f32 %v333, %v334
      %v336 = vrot.slane %v335, 2
      %v337 = vmax.f32 %v335, %v336
      %v338 = vrot.slane %v337, 1
      %v339 = vmax.f32 %v337, %v338
      %v340 = vsel %vm179, %v283, -inf
      %341 = vmax.xlane.f32.xlu0 %v340
      %v342 = vpop.xlane.xlu0 %341
      %v343 = vsel %vm179, %v284, -inf
      %344 = vmax.xlane.f32.xlu0 %v343
      %v345 = vpop.xlane.xlu0 %344
      %v346 = vsel %vm186, %v285, -inf
      %347 = vmax.xlane.f32.xlu0 %v346
      %v348 = vpop.xlane.xlu0 %347
      %v349 = vsel %vm129, %v348, -inf
      %v350 = vmax.f32 %v342, %v345
      %v351 = vmax.f32 %v350, %v349
      %v352 = vrot.slane %v351, 4
      %v353 = vmax.f32 %v351, %v352
      %v354 = vrot.slane %v353, 2
      %v355 = vmax.f32 %v353, %v354
      %v356 = vrot.slane %v355, 1
      %v357 = vmax.f32 %v355, %v356
      %v358 = vsel %vm199, %v303, %v321
      %v359 = vsel %vm201, %v358, %v339
      %v360 = vsel %vm203, %v359, %v357
      %v361 = vld [vmem:[%s110 + $0x3c] sm:$0xff]
      %v362 = vld [vmem:[%s110 + $0x44] sm:$0xff]
      %v363 = vld [vmem:[%s110 + $0x4c] sm:$0x1f]
      %v364 = vsel %vm118, %v361, -inf
      %365 = vmax.xlane.f32.xlu0 %v364
      %v366 = vpop.xlane.xlu0 %365
      %v367 = vsel %vm118, %v362, -inf
      %368 = vmax.xlane.f32.xlu0 %v367
      %v369 = vpop.xlane.xlu0 %368
      %v370 = vsel %vm125, %v363, -inf
      %371 = vmax.xlane.f32.xlu0 %v370
      %v372 = vpop.xlane.xlu0 %371
      %v373 = vsel %vm129, %v372, -inf
      %v374 = vmax.f32 %v366, %v369
      %v375 = vmax.f32 %v374, %v373
      %v376 = vrot.slane %v375, 4
      %v377 = vmax.f32 %v375, %v376
      %v378 = vrot.slane %v377, 2
      %v379 = vmax.f32 %v377, %v378
      %v380 = vrot.slane %v379, 1
      %v381 = vmax.f32 %v379, %v380
      %v382 = vsel %vm139, %v361, -inf
      %383 = vmax.xlane.f32.xlu0 %v382
      %v384 = vpop.xlane.xlu0 %383
      %v385 = vsel %vm139, %v362, -inf
      %386 = vmax.xlane.f32.xlu0 %v385
      %v387 = vpop.xlane.xlu0 %386
      %v388 = vsel %vm146, %v363, -inf
      %389 = vmax.xlane.f32.xlu0 %v388
      %v390 = vpop.xlane.xlu0 %389
      %v391 = vsel %vm129, %v390, -inf
      %v392 = vmax.f32 %v384, %v387
      %v393 = vmax.f32 %v392, %v391
      %v394 = vrot.slane %v393, 4
      %v395 = vmax.f32 %v393, %v394
      %v396 = vrot.slane %v395, 2
      %v397 = vmax.f32 %v395, %v396
      %v398 = vrot.slane %v397, 1
      %v399 = vmax.f32 %v397, %v398
      %v400 = vsel %vm159, %v361, -inf
      %401 = vmax.xlane.f32.xlu0 %v400
      %v402 = vpop.xlane.xlu0 %401
      %v403 = vsel %vm159, %v362, -inf
      %404 = vmax.xlane.f32.xlu0 %v403
      %v405 = vpop.xlane.xlu0 %404
      %v406 = vsel %vm166, %v363, -inf
      %407 = vmax.xlane.f32.xlu0 %v406
      %v408 = vpop.xlane.xlu0 %407
      %v409 = vsel %vm129, %v408, -inf
      %v410 = vmax.f32 %v402, %v405
      %v411 = vmax.f32 %v410, %v409
      %v412 = vrot.slane %v411, 4
      %v413 = vmax.f32 %v411, %v412
      %v414 = vrot.slane %v413, 2
      %v415 = vmax.f32 %v413, %v414
      %v416 = vrot.slane %v415, 1
      %v417 = vmax.f32 %v415, %v416
      %v418 = vsel %vm179, %v361, -inf
      %419 = vmax.xlane.f32.xlu0 %v418
      %v420 = vpop.xlane.xlu0 %419
      %v421 = vsel %vm179, %v362, -inf
      %422 = vmax.xlane.f32.xlu0 %v421
      %v423 = vpop.xlane.xlu0 %422
      %v424 = vsel %vm186, %v363, -inf
      %425 = vmax.xlane.f32.xlu0 %v424
      %v426 = vpop.xlane.xlu0 %425
      %v427 = vsel %vm129, %v426, -inf
      %v428 = vmax.f32 %v420, %v423
      %v429 = vmax.f32 %v428, %v427
      %v430 = vrot.slane %v429, 4
      %v431 = vmax.f32 %v429, %v430
      %v432 = vrot.slane %v431, 2
      %v433 = vmax.f32 %v431, %v432
      %v434 = vrot.slane %v433, 1
      %v435 = vmax.f32 %v433, %v434
      %v436 = vsel %vm199, %v381, %v399
      %v437 = vsel %vm201, %v436, %v417
      %v438 = vsel %vm203, %v437, %v435
      %v440 = vrot.slane %v282, 7
      %v443 = vrot.slane %v360, 6
      %v446 = vrot.slane %v438, 5
      %vm448 = vcmask 1040384
      %v449 = vsel %vm448, %v204, %v440
      %vm450 = vcmask 1041408
      %v451 = vsel %vm450, %v449, %v443
      %vm452 = vcmask 1042432
      %v453 = vsel %vm452, %v451, %v446
      %vm454 = vcmask 27648
      %455 = vst.msk [vmem:[%s114] sm:$0xf] %vm454, %v453
      %p456 = scmp.lt.s32.totalorder %s12, 15
      %s457 = scalar_select %p456, %s12, 15
      %s458 = smul.addr %s457, 4
      %s459 = scalar_lea.vmem %s1, %s458
      // Predicated region
      $region25: #{single_feature_conv_forward.15} parent=23 // pred_check
        %p460 = pneg %p56
      $region26: #{single_feature_conv_forward.15} parent=23 // pred_check_branch
        %462 = sbr.rel (%p460) target = $region28
      $region27: #{single_feature_conv_forward.15} parent=23 // pred_region
        _
      $region28: #{single_feature_conv_forward.15} parent=23 // pred_fallthru
        _
    $region24: #{single_feature_conv_forward.15} parent=5 // pred_fallthru
      _
    %p463 = scmp.le.s32.totalorder 2, %s7
    // Predicated region
    $region29: #{single_feature_conv_forward.15} parent=5 // pred_check
      %p464 = pneg %p463
    $region30: #{single_feature_conv_forward.15} parent=5 // pred_check_branch
      %466 = sbr.rel (%p464) target = $region32
    $region31: #{single_feature_conv_forward.15} parent=5 // pred_region
      %s467 = ssub.s32 %s7, 2
      // Predicated region
      $region33: #{single_feature_conv_forward.15} parent=31 // pred_check
        %p468 = pneg %p62
      $region34: #{single_feature_conv_forward.15} parent=31 // pred_check_branch
        %470 = sbr.rel (%p468) target = $region36
      $region35: #{single_feature_conv_forward.15} parent=31 // pred_region
        %p471 = scmp.lt.s32.totalorder %s13, 15
        %s472 = scalar_select %p471, %s13, 15
        %s473 = smul.addr %s472, 4
        %s474 = scalar_lea.vmem %s1, %s473
      $region36: #{single_feature_conv_forward.15} parent=31 // pred_fallthru
        _
    $region32: #{single_feature_conv_forward.15} parent=5 // pred_fallthru
      _
  $region6: #{single_feature_conv_forward.15} parent=0 // loop_footer
    %s11 = sadd.s32 1, %s7
  $region7: #{single_feature_conv_forward.15} parent=0 // loop_footer_branch
    %6 = sbr.rel target = $region3
  $region8: #{single_feature_conv_forward.15} parent=0 // loop_exit
    _

</llo_original>
